<compile_context>
chip_gen: v6e
topology: v6e:2x2x1
jax: 0.10.0
libtpu: 0.0.40
codegen_flags: <defaults>
</compile_context>

<pallas_src>
import jax
import jax.numpy as jnp
from jax import lax
from jax.experimental import pallas as pl
from jax.experimental.pallas import tpu as pltpu


def _round_up(x, m):
    return ((x + m - 1) // m) * m


# ----------------------------- Pallas kernel --------------------------------
def _gru_layer_kernel(x_ref, wih_ref, whh_ref, bgx_ref, bhn_ref,
                      out_ref, h_scr, gx_scr):
    """One GRU layer, one time-chunk per grid step.

    Grid: (batch_tiles ["parallel"], time_chunks ["arbitrary"]).

    x_ref   : (Tc, Bt, Ep)     bf16 chunk of (padded) inputs
    wih_ref : (Ep, 3*Hp)       bf16 input->hidden weights (gate-padded, r|z|n)
    whh_ref : (Hp, 3*Hp)       bf16 hidden->hidden weights (gate-padded)
    bgx_ref : (1, 3*Hp)        f32  b_ih with b_hr/b_hz folded in (n-slice = b_in)
    bhn_ref : (1, Hp)          f32  b_hn (must stay inside r*(...))
    out_ref : (Tc, Bt, Hp)     bf16 per-timestep hidden outputs
    h_scr   : (Bt, Hp)         f32  hidden state carried across time chunks
    gx_scr  : (Tc, Bt, 3*Hp)   f32  hoisted input projection for the chunk
    """
    c = pl.program_id(1)                       # time-chunk index (sequential)

    @pl.when(c == 0)
    def _():
        h_scr[...] = jnp.zeros_like(h_scr)

    Tc, Bt, Ep = x_ref.shape
    Hp = h_scr.shape[-1]

    # ---- hoisted input projection: one throughput matmul per chunk ----
    x2 = x_ref[...].reshape(Tc * Bt, Ep)                       # bf16
    gx = jnp.dot(x2, wih_ref[...], preferred_element_type=jnp.float32)
    gx = gx + bgx_ref[...]                       # b_ih + [b_hr, b_hz, 0] folded once
    gx_scr[...] = gx.reshape(Tc, Bt, 3 * Hp)

    whh = whh_ref[...]                                         # bf16
    bhn = jnp.broadcast_to(bhn_ref[...], (Bt, Hp))             # hoisted broadcast

    # ---- serial recurrence: only h @ W_hh stays in the loop ----
    def step(t, h):
        gxt = gx_scr[t]                                        # (Bt, 3*Hp) f32
        gh = jnp.dot(h.astype(whh.dtype), whh,
                     preferred_element_type=jnp.float32)
        r = jax.nn.sigmoid(gxt[:, 0:Hp] + gh[:, 0:Hp])
        z = jax.nn.sigmoid(gxt[:, Hp:2 * Hp] + gh[:, Hp:2 * Hp])
        n = jnp.tanh(gxt[:, 2 * Hp:] + r * (gh[:, 2 * Hp:] + bhn))
        h_new = (1.0 - z) * n + z * h
        out_ref[t] = h_new.astype(out_ref.dtype)
        return h_new

    # Bounded unroll: keeps LLO visibility without blowing the vreg file at
    # large batch tiles.
    h_fin = lax.fori_loop(0, Tc, step, h_scr[...], unroll=min(Tc, 8))
    h_scr[...] = h_fin


# --------------------------- padding / packing -------------------------------
def _pad_gate_params(wih_t, whh_t, bih, bhh, H, H_pad, E, E_pad):
    """Re-block (.., 3H) gate-concatenated params into (.., 3*H_pad), zero pad.

    Also folds b_ih + b_hh for the r/z gates into one bias (the n-gate keeps
    only b_in there; b_hn is returned separately since it sits inside r*(...)).
    """
    wih_p = jnp.zeros((E_pad, 3 * H_pad), jnp.float32)
    whh_p = jnp.zeros((H_pad, 3 * H_pad), jnp.float32)
    bgx_p = jnp.zeros((1, 3 * H_pad), jnp.float32)
    bhn_p = jnp.zeros((1, H_pad), jnp.float32)
    for g in range(3):
        src = slice(g * H, (g + 1) * H)
        dst = slice(g * H_pad, g * H_pad + H)
        wih_p = wih_p.at[:E, dst].set(wih_t[:, src])
        whh_p = whh_p.at[:H, dst].set(whh_t[:, src])
        bias = bih[:, src]
        if g < 2:                                   # r, z: b_hh commutes -> fold
            bias = bias + bhh[:, src]
        bgx_p = bgx_p.at[:, dst].set(bias)
    bhn_p = bhn_p.at[:, :H].set(bhh[:, 2 * H:3 * H])
    # bf16 weights: MXU-native dtype, halves weight DMA / VMEM footprint.
    return (wih_p.astype(jnp.bfloat16), whh_p.astype(jnp.bfloat16),
            bgx_p, bhn_p)


def _vmem_limit_bytes():
    """Generation-aware VMEM limit (~3/4 of capacity, capped at 100 MiB)."""
    try:
        cap = pltpu.get_tpu_info().vmem_capacity_bytes
    except Exception:
        cap = 64 * 1024 * 1024          # conservative (v7x per-TC) fallback
    return max(32 * 1024 * 1024, min(int(cap) * 3 // 4, 100 * 1024 * 1024))


def _pick_time_chunk(T, b_tile, e_pad, h_pad, budget_bytes):
    """Largest power-of-two time chunk whose VMEM footprint fits the budget."""
    best = 1
    for tc in (1, 2, 4, 8, 16, 32):
        if tc > T:
            break
        x_blk = 2 * tc * b_tile * e_pad * 2           # bf16, double-buffered
        o_blk = 2 * tc * b_tile * h_pad * 2           # bf16, double-buffered
        w_blk = 2 * (e_pad + h_pad) * 3 * h_pad * 2   # bf16, double-buffered
        gx = tc * b_tile * 3 * h_pad * 4              # f32 scratch
        h_s = b_tile * h_pad * 4
        if x_blk + o_blk + w_blk + gx + h_s <= budget_bytes:
            best = tc
    return best


# ------------------------------ layer wrapper --------------------------------
def gru_layer_pallas(x_p, wih_p, whh_p, bgx_p, bhn_p, *, t_chunk, b_tile,
                     vmem_limit):
    """x_p: padded (T_pad, B_pad, E_pad) bf16 -> padded (T_pad, B_pad, H_pad) bf16."""
    T_pad, B_pad, E_pad = x_p.shape
    H_pad = whh_p.shape[0]
    n_btiles = B_pad // b_tile
    n_chunks = T_pad // t_chunk

    flops = 2 * T_pad * B_pad * (E_pad + H_pad) * 3 * H_pad
    transcendentals = T_pad * B_pad * 3 * H_pad
    bytes_accessed = (T_pad * B_pad * E_pad * 2                 # x (bf16)
                      + (E_pad + H_pad) * 3 * H_pad * 2         # weights (bf16)
                      + 4 * H_pad * 4                           # biases (f32)
                      + T_pad * B_pad * H_pad * 2)              # output (bf16)

    out_p = pl.pallas_call(
        _gru_layer_kernel,
        out_shape=jax.ShapeDtypeStruct((T_pad, B_pad, H_pad), jnp.bfloat16),
        grid_spec=pltpu.PrefetchScalarGridSpec(
            num_scalar_prefetch=0,
            grid=(n_btiles, n_chunks),
            in_specs=[
                pl.BlockSpec((t_chunk, b_tile, E_pad), lambda b, c: (c, b, 0)),
                pl.BlockSpec((E_pad, 3 * H_pad), lambda b, c: (0, 0)),
                pl.BlockSpec((H_pad, 3 * H_pad), lambda b, c: (0, 0)),
                pl.BlockSpec((1, 3 * H_pad), lambda b, c: (0, 0)),
                pl.BlockSpec((1, H_pad), lambda b, c: (0, 0)),
            ],
            out_specs=pl.BlockSpec((t_chunk, b_tile, H_pad),
                                   lambda b, c: (c, b, 0)),
            scratch_shapes=[
                pltpu.VMEM((b_tile, H_pad), jnp.float32),               # h carry
                pltpu.VMEM((t_chunk, b_tile, 3 * H_pad), jnp.float32),  # GX
            ],
        ),
        compiler_params=pltpu.CompilerParams(
            dimension_semantics=("parallel", "arbitrary"),
            vmem_limit_bytes=vmem_limit,
        ),
        cost_estimate=pl.CostEstimate(flops=flops,
                                      transcendentals=transcendentals,
                                      bytes_accessed=bytes_accessed),
    )(x_p, wih_p, whh_p, bgx_p, bhn_p)
    return out_p


# ------------------------ parameter init (PyTorch-like) ---------------------
def init_params(key, vocab_size, embed_size, num_hiddens, num_layers):
    keys = jax.random.split(key, 1 + 4 * num_layers)
    params = {}
    # nn.Embedding default init: N(0, 1)
    params["embedding"] = jax.random.normal(
        keys[0], (vocab_size, embed_size), jnp.float32)
    k = 1.0 / jnp.sqrt(num_hiddens)
    layers = []
    for l in range(num_layers):
        in_size = embed_size if l == 0 else num_hiddens
        kk = keys[1 + 4 * l: 1 + 4 * (l + 1)]
        # nn.GRU default init: U(-1/sqrt(H), 1/sqrt(H)); gate order (r, z, n)
        wih = jax.random.uniform(kk[0], (3 * num_hiddens, in_size),
                                 jnp.float32, -k, k)
        whh = jax.random.uniform(kk[1], (3 * num_hiddens, num_hiddens),
                                 jnp.float32, -k, k)
        bih = jax.random.uniform(kk[2], (3 * num_hiddens,), jnp.float32, -k, k)
        bhh = jax.random.uniform(kk[3], (3 * num_hiddens,), jnp.float32, -k, k)
        layers.append(dict(wih_t=wih.T, whh_t=whh.T,
                           bih=bih.reshape(1, -1), bhh=bhh.reshape(1, -1)))
    params["layers"] = layers
    return params


# ------------------------------ forward pass --------------------------------
def seq2seq_encoder_forward(params, X):
    """X: (batch, seq) int32 ids -> (output (T, B, H), state (L, B, H))."""
    B, T = X.shape
    emb = params["embedding"]
    E = emb.shape[1]
    H = params["layers"][0]["whh_t"].shape[0]

    H_pad = _round_up(H, 128)              # lane-dense output / gate slices
    E_pad = _round_up(E, 128)              # lane-dense K for the GX matmul
    B_pad = _round_up(B, 8)
    if B_pad > 128:
        b_tile = 128                       # multiple batch tiles -> "parallel"
        B_pad = _round_up(B_pad, b_tile)   # axis can feed v7x's 2nd TensorCore
    else:
        b_tile = B_pad                     # single full-batch tile

    vmem_limit = _vmem_limit_bytes()
    t_chunk = _pick_time_chunk(T, b_tile, max(E_pad, H_pad), H_pad,
                               int(vmem_limit * 0.7))
    T_pad = _round_up(T, t_chunk)

    # Embedding gather built time-major directly; pad + cast to bf16 once.
    # (Data-dependent gather itself stays in XLA.)
    x = emb[X.T]                                           # (T, B, E) f32
    x_p = jnp.zeros((T_pad, B_pad, E_pad), jnp.bfloat16)
    x_p = x_p.at[:T, :B, :E].set(x.astype(jnp.bfloat16))

    states = []
    in_size, in_pad = E, E_pad
    for layer in params["layers"]:
        wih_p, whh_p, bgx_p, bhn_p = _pad_gate_params(
            layer["wih_t"], layer["whh_t"], layer["bih"], layer["bhh"],
            H, H_pad, in_size, in_pad)
        # Padded bf16 activations flow directly into the next layer — no
        # trim / re-pad round trip between layers.
        x_p = gru_layer_pallas(x_p, wih_p, whh_p, bgx_p, bhn_p,
                               t_chunk=t_chunk, b_tile=b_tile,
                               vmem_limit=vmem_limit)
        states.append(x_p[T - 1, :B, :H].astype(jnp.float32))
        in_size, in_pad = H, H_pad

    output = x_p[:T, :B, :H].astype(jnp.float32)   # trim once, at the end
    state = jnp.stack(states, axis=0)              # (num_layers, B, H)
    return output, state


# ------------------------------ pure-JAX ref ---------------------------------
def _ref_gru_layer(x, wih_t, whh_t, bih, bhh):
    H = whh_t.shape[0]

    def step(h, xt):
        gx = xt @ wih_t + bih
        gh = h @ whh_t + bhh
        r = jax.nn.sigmoid(gx[:, :H] + gh[:, :H])
        z = jax.nn.sigmoid(gx[:, H:2 * H] + gh[:, H:2 * H])
        n = jnp.tanh(gx[:, 2 * H:] + r * gh[:, 2 * H:])
        h_new = (1.0 - z) * n + z * h
        return h_new, h_new

    h0 = jnp.zeros((x.shape[1], H), jnp.float32)
    hT, ys = jax.lax.scan(step, h0, x)
    return ys, hT


def _ref_forward(params, X):
    x = params["embedding"][X.T]
    states = []
    for layer in params["layers"]:
        x, h = _ref_gru_layer(x, layer["wih_t"], layer["whh_t"],
                              layer["bih"], layer["bhh"])
        states.append(h)
    return x, jnp.stack(states, axis=0)


# ---------------------------------- main -------------------------------------
if __name__ == "__main__":
    # Matches the PyTorch spec: Embedding(input_size, hidden_size) + one
    # GRU(hidden_size, hidden_size) layer, zero initial hidden state.
    vocab_size, hidden_size, num_layers = 30, 32, 1
    embed_size = hidden_size
    batch, seq_len = 2, 8

    key = jax.random.PRNGKey(0)
    pkey, xkey = jax.random.split(key)
    params = init_params(pkey, vocab_size, embed_size, hidden_size, num_layers)
    X = jax.random.randint(xkey, (batch, seq_len), 0, vocab_size, jnp.int32)

    fwd = jax.jit(seq2seq_encoder_forward)
    output, state = fwd(params, X)
    output = jax.block_until_ready(output)
    state = jax.block_until_ready(state)

    assert output.shape == (seq_len, batch, hidden_size)
    assert state.shape == (num_layers, batch, hidden_size)

    # Sanity check against a pure-JAX f32 reference (bf16 MXU inputs and bf16
    # activation storage -> loose tolerance).
    ref_out, ref_state = _ref_forward(params, X)
    assert jnp.allclose(output, ref_out, atol=5e-2, rtol=5e-2)
    assert jnp.allclose(state, ref_state, atol=5e-2, rtol=5e-2)

    print("KERNEL_OK")
</pallas_src>

<mosaic_0001>
module attributes {stable_mosaic.version = 11 : i64} {
  func.func @_gru_layer_kernel(%arg0: i32, %arg1: i32, %arg2: memref<8x8x128xbf16, #tpu.memory_space<vmem>>, %arg3: memref<128x384xbf16, #tpu.memory_space<vmem>>, %arg4: memref<128x384xbf16, #tpu.memory_space<vmem>>, %arg5: memref<1x384xf32, #tpu.memory_space<vmem>>, %arg6: memref<1x128xf32, #tpu.memory_space<vmem>>, %arg7: memref<8x8x128xbf16, #tpu.memory_space<vmem>>, %arg8: memref<8x128xf32, #tpu.memory_space<vmem>>, %arg9: memref<8x8x384xf32, #tpu.memory_space<vmem>>) attributes {dimension_semantics = [#tpu.dimension_semantics<parallel>, #tpu.dimension_semantics<arbitrary>], iteration_bounds = array<i64: 1, 1>, scalar_prefetch = 0 : i64, scratch_operands = 2 : i64, tpu.core_type = #tpu.core_type<tc>, window_params = [{transform_indices = @transform_0, window_bounds = array<i64: 8, 8, 128>}, {pipeline_mode = #tpu.pipeline_mode<synchronous>, transform_indices = @transform_1, window_bounds = array<i64: 128, 384>}, {pipeline_mode = #tpu.pipeline_mode<synchronous>, transform_indices = @transform_2, window_bounds = array<i64: 128, 384>}, {pipeline_mode = #tpu.pipeline_mode<synchronous>, transform_indices = @transform_3, window_bounds = array<i64: 1, 384>}, {pipeline_mode = #tpu.pipeline_mode<synchronous>, transform_indices = @transform_4, window_bounds = array<i64: 1, 128>}, {transform_indices = @transform_5, window_bounds = array<i64: 8, 8, 128>}]} {
    %c0_i32 = arith.constant 0 : i32
    %0 = arith.cmpi eq, %arg1, %c0_i32 : i32
    %1 = arith.extui %0 : i1 to i32
    %c0_i32_0 = arith.constant 0 : i32
    %2 = arith.cmpi ne, %1, %c0_i32_0 : i32
    scf.if %2 {
      %cst_83 = arith.constant 0.000000e+00 : f32
      %314 = vector.broadcast %cst_83 : f32 to vector<8x128xf32>
      %c0_84 = arith.constant 0 : index
      %c0_85 = arith.constant 0 : index
      %315 = vector.load %arg8[%c0_84, %c0_85] : memref<8x128xf32, #tpu.memory_space<vmem>>, vector<8x128xf32>
      tpu.vector_store %arg8[%c0_84, %c0_85], %314 {strides = array<i32>} : memref<8x128xf32, #tpu.memory_space<vmem>>, vector<8x128xf32>,
    } else {
    }
    %c0 = arith.constant 0 : index
    %c0_1 = arith.constant 0 : index
    %c0_2 = arith.constant 0 : index
    %3 = vector.load %arg2[%c0, %c0_1, %c0_2] : memref<8x8x128xbf16, #tpu.memory_space<vmem>>, vector<8x8x128xbf16>
    %4 = vector.shape_cast %3 : vector<8x8x128xbf16> to vector<64x128xbf16>
    %c0_3 = arith.constant 0 : index
    %c0_4 = arith.constant 0 : index
    %5 = vector.load %arg3[%c0_3, %c0_4] : memref<128x384xbf16, #tpu.memory_space<vmem>>, vector<128x384xbf16>
    %cst = arith.constant dense<0.000000e+00> : vector<64x384xf32>
    %6 = tpu.matmul %4, %5, %cst {dimension_numbers = #tpu.dot_dimension_numbers<[1], [0], [0], [1], [0, 0, 1, 1], [], []>} : vector<64x128xbf16>, vector<128x384xbf16>, vector<64x384xf32> -> vector<64x384xf32>
    %c0_5 = arith.constant 0 : index
    %c0_6 = arith.constant 0 : index
    %7 = vector.load %arg5[%c0_5, %c0_6] : memref<1x384xf32, #tpu.memory_space<vmem>>, vector<1x384xf32>
    %8 = vector.broadcast %7 : vector<1x384xf32> to vector<64x384xf32>
    %9 = arith.addf %6, %8 : vector<64x384xf32>
    %10 = vector.shape_cast %9 : vector<64x384xf32> to vector<8x8x384xf32>
    %c0_7 = arith.constant 0 : index
    %c0_8 = arith.constant 0 : index
    %c0_9 = arith.constant 0 : index
    %11 = vector.load %arg9[%c0_7, %c0_8, %c0_9] : memref<8x8x384xf32, #tpu.memory_space<vmem>>, vector<8x8x384xf32>
    tpu.vector_store %arg9[%c0_7, %c0_8, %c0_9], %10 {strides = array<i32>} : memref<8x8x384xf32, #tpu.memory_space<vmem>>, vector<8x8x384xf32>,
    %c0_10 = arith.constant 0 : index
    %c0_11 = arith.constant 0 : index
    %12 = vector.load %arg4[%c0_10, %c0_11] : memref<128x384xbf16, #tpu.memory_space<vmem>>, vector<128x384xbf16>
    %c0_12 = arith.constant 0 : index
    %c0_13 = arith.constant 0 : index
    %13 = vector.load %arg6[%c0_12, %c0_13] : memref<1x128xf32, #tpu.memory_space<vmem>>, vector<1x128xf32>
    %14 = vector.shape_cast %13 : vector<1x128xf32> to vector<1x128xf32>
    %15 = vector.broadcast %14 : vector<1x128xf32> to vector<8x128xf32>
    %c0_14 = arith.constant 0 : index
    %c0_15 = arith.constant 0 : index
    %16 = vector.load %arg8[%c0_14, %c0_15] : memref<8x128xf32, #tpu.memory_space<vmem>>, vector<8x128xf32>
    %c0_i32_16 = arith.constant 0 : i32
    %17 = arith.index_cast %c0_i32_16 : i32 to index
    %c0_17 = arith.constant 0 : index
    %c0_18 = arith.constant 0 : index
    %18 = vector.load %arg9[%17, %c0_17, %c0_18] : memref<8x8x384xf32, #tpu.memory_space<vmem>>, vector<1x8x384xf32>
    %19 = vector.shape_cast %18 : vector<1x8x384xf32> to vector<8x384xf32>
    %20 = arith.truncf %16 : vector<8x128xf32> to vector<8x128xbf16>
    %cst_19 = arith.constant dense<0.000000e+00> : vector<8x384xf32>
    %21 = tpu.matmul %20, %12, %cst_19 {dimension_numbers = #tpu.dot_dimension_numbers<[1], [0], [0], [1], [0, 0, 1, 1], [], []>} : vector<8x128xbf16>, vector<128x384xbf16>, vector<8x384xf32> -> vector<8x384xf32>
    %22 = vector.extract_strided_slice %19 {offsets = [0, 0], sizes = [8, 128], strides = [1, 1]} : vector<8x384xf32> to vector<8x128xf32>
    %23 = vector.extract_strided_slice %21 {offsets = [0, 0], sizes = [8, 128], strides = [1, 1]} : vector<8x384xf32> to vector<8x128xf32>
    %24 = arith.addf %22, %23 : vector<8x128xf32>
    %25 = arith.negf %24 : vector<8x128xf32>
    %26 = math.exp %25 : vector<8x128xf32>
    %cst_20 = arith.constant 1.000000e+00 : f32
    %27 = vector.broadcast %cst_20 : f32 to vector<8x128xf32>
    %28 = arith.addf %27, %26 : vector<8x128xf32>
    %29 = arith.divf %27, %28 : vector<8x128xf32>
    %30 = vector.extract_strided_slice %19 {offsets = [0, 128], sizes = [8, 128], strides = [1, 1]} : vector<8x384xf32> to vector<8x128xf32>
    %31 = vector.extract_strided_slice %21 {offsets = [0, 128], sizes = [8, 128], strides = [1, 1]} : vector<8x384xf32> to vector<8x128xf32>
    %32 = arith.addf %30, %31 : vector<8x128xf32>
    %33 = arith.negf %32 : vector<8x128xf32>
    %34 = math.exp %33 : vector<8x128xf32>
    %cst_21 = arith.constant 1.000000e+00 : f32
    %35 = vector.broadcast %cst_21 : f32 to vector<8x128xf32>
    %36 = arith.addf %35, %34 : vector<8x128xf32>
    %37 = arith.divf %35, %36 : vector<8x128xf32>
    %38 = vector.extract_strided_slice %19 {offsets = [0, 256], sizes = [8, 128], strides = [1, 1]} : vector<8x384xf32> to vector<8x128xf32>
    %39 = vector.extract_strided_slice %21 {offsets = [0, 256], sizes = [8, 128], strides = [1, 1]} : vector<8x384xf32> to vector<8x128xf32>
    %40 = arith.addf %39, %15 : vector<8x128xf32>
    %41 = arith.mulf %29, %40 : vector<8x128xf32>
    %42 = arith.addf %38, %41 : vector<8x128xf32>
    %43 = math.tanh %42 : vector<8x128xf32>
    %cst_22 = arith.constant 1.000000e+00 : f32
    %44 = vector.broadcast %cst_22 : f32 to vector<8x128xf32>
    %45 = arith.subf %44, %37 : vector<8x128xf32>
    %46 = arith.mulf %45, %43 : vector<8x128xf32>
    %47 = arith.mulf %37, %16 : vector<8x128xf32>
    %48 = arith.addf %46, %47 : vector<8x128xf32>
    %49 = arith.truncf %48 : vector<8x128xf32> to vector<8x128xbf16>
    %50 = arith.index_cast %c0_i32_16 : i32 to index
    %c0_23 = arith.constant 0 : index
    %c0_24 = arith.constant 0 : index
    %51 = vector.load %arg7[%50, %c0_23, %c0_24] : memref<8x8x128xbf16, #tpu.memory_space<vmem>>, vector<1x8x128xbf16>
    %52 = vector.shape_cast %51 : vector<1x8x128xbf16> to vector<8x128xbf16>
    %53 = vector.shape_cast %49 : vector<8x128xbf16> to vector<1x8x128xbf16>
    tpu.vector_store %arg7[%50, %c0_23, %c0_24], %53 {strides = array<i32>} : memref<8x8x128xbf16, #tpu.memory_space<vmem>>, vector<1x8x128xbf16>,
    %c1_i32 = arith.constant 1 : i32
    %54 = arith.index_cast %c1_i32 : i32 to index
    %c0_25 = arith.constant 0 : index
    %c0_26 = arith.constant 0 : index
    %55 = vector.load %arg9[%54, %c0_25, %c0_26] : memref<8x8x384xf32, #tpu.memory_space<vmem>>, vector<1x8x384xf32>
    %56 = vector.shape_cast %55 : vector<1x8x384xf32> to vector<8x384xf32>
    %57 = arith.truncf %48 : vector<8x128xf32> to vector<8x128xbf16>
    %cst_27 = arith.constant dense<0.000000e+00> : vector<8x384xf32>
    %58 = tpu.matmul %57, %12, %cst_27 {dimension_numbers = #tpu.dot_dimension_numbers<[1], [0], [0], [1], [0, 0, 1, 1], [], []>} : vector<8x128xbf16>, vector<128x384xbf16>, vector<8x384xf32> -> vector<8x384xf32>
    %59 = vector.extract_strided_slice %56 {offsets = [0, 0], sizes = [8, 128], strides = [1, 1]} : vector<8x384xf32> to vector<8x128xf32>
    %60 = vector.extract_strided_slice %58 {offsets = [0, 0], sizes = [8, 128], strides = [1, 1]} : vector<8x384xf32> to vector<8x128xf32>
    %61 = arith.addf %59, %60 : vector<8x128xf32>
    %62 = arith.negf %61 : vector<8x128xf32>
    %63 = math.exp %62 : vector<8x128xf32>
    %cst_28 = arith.constant 1.000000e+00 : f32
    %64 = vector.broadcast %cst_28 : f32 to vector<8x128xf32>
    %65 = arith.addf %64, %63 : vector<8x128xf32>
    %66 = arith.divf %64, %65 : vector<8x128xf32>
    %67 = vector.extract_strided_slice %56 {offsets = [0, 128], sizes = [8, 128], strides = [1, 1]} : vector<8x384xf32> to vector<8x128xf32>
    %68 = vector.extract_strided_slice %58 {offsets = [0, 128], sizes = [8, 128], strides = [1, 1]} : vector<8x384xf32> to vector<8x128xf32>
    %69 = arith.addf %67, %68 : vector<8x128xf32>
    %70 = arith.negf %69 : vector<8x128xf32>
    %71 = math.exp %70 : vector<8x128xf32>
    %cst_29 = arith.constant 1.000000e+00 : f32
    %72 = vector.broadcast %cst_29 : f32 to vector<8x128xf32>
    %73 = arith.addf %72, %71 : vector<8x128xf32>
    %74 = arith.divf %72, %73 : vector<8x128xf32>
    %75 = vector.extract_strided_slice %56 {offsets = [0, 256], sizes = [8, 128], strides = [1, 1]} : vector<8x384xf32> to vector<8x128xf32>
    %76 = vector.extract_strided_slice %58 {offsets = [0, 256], sizes = [8, 128], strides = [1, 1]} : vector<8x384xf32> to vector<8x128xf32>
    %77 = arith.addf %76, %15 : vector<8x128xf32>
    %78 = arith.mulf %66, %77 : vector<8x128xf32>
    %79 = arith.addf %75, %78 : vector<8x128xf32>
    %80 = math.tanh %79 : vector<8x128xf32>
    %cst_30 = arith.constant 1.000000e+00 : f32
    %81 = vector.broadcast %cst_30 : f32 to vector<8x128xf32>
    %82 = arith.subf %81, %74 : vector<8x128xf32>
    %83 = arith.mulf %82, %80 : vector<8x128xf32>
    %84 = arith.mulf %74, %48 : vector<8x128xf32>
    %85 = arith.addf %83, %84 : vector<8x128xf32>
    %86 = arith.truncf %85 : vector<8x128xf32> to vector<8x128xbf16>
    %87 = arith.index_cast %c1_i32 : i32 to index
    %c0_31 = arith.constant 0 : index
    %c0_32 = arith.constant 0 : index
    %88 = vector.load %arg7[%87, %c0_31, %c0_32] : memref<8x8x128xbf16, #tpu.memory_space<vmem>>, vector<1x8x128xbf16>
    %89 = vector.shape_cast %88 : vector<1x8x128xbf16> to vector<8x128xbf16>
    %90 = vector.shape_cast %86 : vector<8x128xbf16> to vector<1x8x128xbf16>
    tpu.vector_store %arg7[%87, %c0_31, %c0_32], %90 {strides = array<i32>} : memref<8x8x128xbf16, #tpu.memory_space<vmem>>, vector<1x8x128xbf16>,
    %c2_i32 = arith.constant 2 : i32
    %91 = arith.index_cast %c2_i32 : i32 to index
    %c0_33 = arith.constant 0 : index
    %c0_34 = arith.constant 0 : index
    %92 = vector.load %arg9[%91, %c0_33, %c0_34] : memref<8x8x384xf32, #tpu.memory_space<vmem>>, vector<1x8x384xf32>
    %93 = vector.shape_cast %92 : vector<1x8x384xf32> to vector<8x384xf32>
    %94 = arith.truncf %85 : vector<8x128xf32> to vector<8x128xbf16>
    %cst_35 = arith.constant dense<0.000000e+00> : vector<8x384xf32>
    %95 = tpu.matmul %94, %12, %cst_35 {dimension_numbers = #tpu.dot_dimension_numbers<[1], [0], [0], [1], [0, 0, 1, 1], [], []>} : vector<8x128xbf16>, vector<128x384xbf16>, vector<8x384xf32> -> vector<8x384xf32>
    %96 = vector.extract_strided_slice %93 {offsets = [0, 0], sizes = [8, 128], strides = [1, 1]} : vector<8x384xf32> to vector<8x128xf32>
    %97 = vector.extract_strided_slice %95 {offsets = [0, 0], sizes = [8, 128], strides = [1, 1]} : vector<8x384xf32> to vector<8x128xf32>
    %98 = arith.addf %96, %97 : vector<8x128xf32>
    %99 = arith.negf %98 : vector<8x128xf32>
    %100 = math.exp %99 : vector<8x128xf32>
    %cst_36 = arith.constant 1.000000e+00 : f32
    %101 = vector.broadcast %cst_36 : f32 to vector<8x128xf32>
    %102 = arith.addf %101, %100 : vector<8x128xf32>
    %103 = arith.divf %101, %102 : vector<8x128xf32>
    %104 = vector.extract_strided_slice %93 {offsets = [0, 128], sizes = [8, 128], strides = [1, 1]} : vector<8x384xf32> to vector<8x128xf32>
    %105 = vector.extract_strided_slice %95 {offsets = [0, 128], sizes = [8, 128], strides = [1, 1]} : vector<8x384xf32> to vector<8x128xf32>
    %106 = arith.addf %104, %105 : vector<8x128xf32>
    %107 = arith.negf %106 : vector<8x128xf32>
    %108 = math.exp %107 : vector<8x128xf32>
    %cst_37 = arith.constant 1.000000e+00 : f32
    %109 = vector.broadcast %cst_37 : f32 to vector<8x128xf32>
    %110 = arith.addf %109, %108 : vector<8x128xf32>
    %111 = arith.divf %109, %110 : vector<8x128xf32>
    %112 = vector.extract_strided_slice %93 {offsets = [0, 256], sizes = [8, 128], strides = [1, 1]} : vector<8x384xf32> to vector<8x128xf32>
    %113 = vector.extract_strided_slice %95 {offsets = [0, 256], sizes = [8, 128], strides = [1, 1]} : vector<8x384xf32> to vector<8x128xf32>
    %114 = arith.addf %113, %15 : vector<8x128xf32>
    %115 = arith.mulf %103, %114 : vector<8x128xf32>
    %116 = arith.addf %112, %115 : vector<8x128xf32>
    %117 = math.tanh %116 : vector<8x128xf32>
    %cst_38 = arith.constant 1.000000e+00 : f32
    %118 = vector.broadcast %cst_38 : f32 to vector<8x128xf32>
    %119 = arith.subf %118, %111 : vector<8x128xf32>
    %120 = arith.mulf %119, %117 : vector<8x128xf32>
    %121 = arith.mulf %111, %85 : vector<8x128xf32>
    %122 = arith.addf %120, %121 : vector<8x128xf32>
    %123 = arith.truncf %122 : vector<8x128xf32> to vector<8x128xbf16>
    %124 = arith.index_cast %c2_i32 : i32 to index
    %c0_39 = arith.constant 0 : index
    %c0_40 = arith.constant 0 : index
    %125 = vector.load %arg7[%124, %c0_39, %c0_40] : memref<8x8x128xbf16, #tpu.memory_space<vmem>>, vector<1x8x128xbf16>
    %126 = vector.shape_cast %125 : vector<1x8x128xbf16> to vector<8x128xbf16>
    %127 = vector.shape_cast %123 : vector<8x128xbf16> to vector<1x8x128xbf16>
    tpu.vector_store %arg7[%124, %c0_39, %c0_40], %127 {strides = array<i32>} : memref<8x8x128xbf16, #tpu.memory_space<vmem>>, vector<1x8x128xbf16>,
    %c3_i32 = arith.constant 3 : i32
    %128 = arith.index_cast %c3_i32 : i32 to index
    %c0_41 = arith.constant 0 : index
    %c0_42 = arith.constant 0 : index
    %129 = vector.load %arg9[%128, %c0_41, %c0_42] : memref<8x8x384xf32, #tpu.memory_space<vmem>>, vector<1x8x384xf32>
    %130 = vector.shape_cast %129 : vector<1x8x384xf32> to vector<8x384xf32>
    %131 = arith.truncf %122 : vector<8x128xf32> to vector<8x128xbf16>
    %cst_43 = arith.constant dense<0.000000e+00> : vector<8x384xf32>
    %132 = tpu.matmul %131, %12, %cst_43 {dimension_numbers = #tpu.dot_dimension_numbers<[1], [0], [0], [1], [0, 0, 1, 1], [], []>} : vector<8x128xbf16>, vector<128x384xbf16>, vector<8x384xf32> -> vector<8x384xf32>
    %133 = vector.extract_strided_slice %130 {offsets = [0, 0], sizes = [8, 128], strides = [1, 1]} : vector<8x384xf32> to vector<8x128xf32>
    %134 = vector.extract_strided_slice %132 {offsets = [0, 0], sizes = [8, 128], strides = [1, 1]} : vector<8x384xf32> to vector<8x128xf32>
    %135 = arith.addf %133, %134 : vector<8x128xf32>
    %136 = arith.negf %135 : vector<8x128xf32>
    %137 = math.exp %136 : vector<8x128xf32>
    %cst_44 = arith.constant 1.000000e+00 : f32
    %138 = vector.broadcast %cst_44 : f32 to vector<8x128xf32>
    %139 = arith.addf %138, %137 : vector<8x128xf32>
    %140 = arith.divf %138, %139 : vector<8x128xf32>
    %141 = vector.extract_strided_slice %130 {offsets = [0, 128], sizes = [8, 128], strides = [1, 1]} : vector<8x384xf32> to vector<8x128xf32>
    %142 = vector.extract_strided_slice %132 {offsets = [0, 128], sizes = [8, 128], strides = [1, 1]} : vector<8x384xf32> to vector<8x128xf32>
    %143 = arith.addf %141, %142 : vector<8x128xf32>
    %144 = arith.negf %143 : vector<8x128xf32>
    %145 = math.exp %144 : vector<8x128xf32>
    %cst_45 = arith.constant 1.000000e+00 : f32
    %146 = vector.broadcast %cst_45 : f32 to vector<8x128xf32>
    %147 = arith.addf %146, %145 : vector<8x128xf32>
    %148 = arith.divf %146, %147 : vector<8x128xf32>
    %149 = vector.extract_strided_slice %130 {offsets = [0, 256], sizes = [8, 128], strides = [1, 1]} : vector<8x384xf32> to vector<8x128xf32>
    %150 = vector.extract_strided_slice %132 {offsets = [0, 256], sizes = [8, 128], strides = [1, 1]} : vector<8x384xf32> to vector<8x128xf32>
    %151 = arith.addf %150, %15 : vector<8x128xf32>
    %152 = arith.mulf %140, %151 : vector<8x128xf32>
    %153 = arith.addf %149, %152 : vector<8x128xf32>
    %154 = math.tanh %153 : vector<8x128xf32>
    %cst_46 = arith.constant 1.000000e+00 : f32
    %155 = vector.broadcast %cst_46 : f32 to vector<8x128xf32>
    %156 = arith.subf %155, %148 : vector<8x128xf32>
    %157 = arith.mulf %156, %154 : vector<8x128xf32>
    %158 = arith.mulf %148, %122 : vector<8x128xf32>
    %159 = arith.addf %157, %158 : vector<8x128xf32>
    %160 = arith.truncf %159 : vector<8x128xf32> to vector<8x128xbf16>
    %161 = arith.index_cast %c3_i32 : i32 to index
    %c0_47 = arith.constant 0 : index
    %c0_48 = arith.constant 0 : index
    %162 = vector.load %arg7[%161, %c0_47, %c0_48] : memref<8x8x128xbf16, #tpu.memory_space<vmem>>, vector<1x8x128xbf16>
    %163 = vector.shape_cast %162 : vector<1x8x128xbf16> to vector<8x128xbf16>
    %164 = vector.shape_cast %160 : vector<8x128xbf16> to vector<1x8x128xbf16>
    tpu.vector_store %arg7[%161, %c0_47, %c0_48], %164 {strides = array<i32>} : memref<8x8x128xbf16, #tpu.memory_space<vmem>>, vector<1x8x128xbf16>,
    %c4_i32 = arith.constant 4 : i32
    %165 = arith.index_cast %c4_i32 : i32 to index
    %c0_49 = arith.constant 0 : index
    %c0_50 = arith.constant 0 : index
    %166 = vector.load %arg9[%165, %c0_49, %c0_50] : memref<8x8x384xf32, #tpu.memory_space<vmem>>, vector<1x8x384xf32>
    %167 = vector.shape_cast %166 : vector<1x8x384xf32> to vector<8x384xf32>
    %168 = arith.truncf %159 : vector<8x128xf32> to vector<8x128xbf16>
    %cst_51 = arith.constant dense<0.000000e+00> : vector<8x384xf32>
    %169 = tpu.matmul %168, %12, %cst_51 {dimension_numbers = #tpu.dot_dimension_numbers<[1], [0], [0], [1], [0, 0, 1, 1], [], []>} : vector<8x128xbf16>, vector<128x384xbf16>, vector<8x384xf32> -> vector<8x384xf32>
    %170 = vector.extract_strided_slice %167 {offsets = [0, 0], sizes = [8, 128], strides = [1, 1]} : vector<8x384xf32> to vector<8x128xf32>
    %171 = vector.extract_strided_slice %169 {offsets = [0, 0], sizes = [8, 128], strides = [1, 1]} : vector<8x384xf32> to vector<8x128xf32>
    %172 = arith.addf %170, %171 : vector<8x128xf32>
    %173 = arith.negf %172 : vector<8x128xf32>
    %174 = math.exp %173 : vector<8x128xf32>
    %cst_52 = arith.constant 1.000000e+00 : f32
    %175 = vector.broadcast %cst_52 : f32 to vector<8x128xf32>
    %176 = arith.addf %175, %174 : vector<8x128xf32>
    %177 = arith.divf %175, %176 : vector<8x128xf32>
    %178 = vector.extract_strided_slice %167 {offsets = [0, 128], sizes = [8, 128], strides = [1, 1]} : vector<8x384xf32> to vector<8x128xf32>
    %179 = vector.extract_strided_slice %169 {offsets = [0, 128], sizes = [8, 128], strides = [1, 1]} : vector<8x384xf32> to vector<8x128xf32>
    %180 = arith.addf %178, %179 : vector<8x128xf32>
    %181 = arith.negf %180 : vector<8x128xf32>
    %182 = math.exp %181 : vector<8x128xf32>
    %cst_53 = arith.constant 1.000000e+00 : f32
    %183 = vector.broadcast %cst_53 : f32 to vector<8x128xf32>
    %184 = arith.addf %183, %182 : vector<8x128xf32>
    %185 = arith.divf %183, %184 : vector<8x128xf32>
    %186 = vector.extract_strided_slice %167 {offsets = [0, 256], sizes = [8, 128], strides = [1, 1]} : vector<8x384xf32> to vector<8x128xf32>
    %187 = vector.extract_strided_slice %169 {offsets = [0, 256], sizes = [8, 128], strides = [1, 1]} : vector<8x384xf32> to vector<8x128xf32>
    %188 = arith.addf %187, %15 : vector<8x128xf32>
    %189 = arith.mulf %177, %188 : vector<8x128xf32>
    %190 = arith.addf %186, %189 : vector<8x128xf32>
    %191 = math.tanh %190 : vector<8x128xf32>
    %cst_54 = arith.constant 1.000000e+00 : f32
    %192 = vector.broadcast %cst_54 : f32 to vector<8x128xf32>
    %193 = arith.subf %192, %185 : vector<8x128xf32>
    %194 = arith.mulf %193, %191 : vector<8x128xf32>
    %195 = arith.mulf %185, %159 : vector<8x128xf32>
    %196 = arith.addf %194, %195 : vector<8x128xf32>
    %197 = arith.truncf %196 : vector<8x128xf32> to vector<8x128xbf16>
    %198 = arith.index_cast %c4_i32 : i32 to index
    %c0_55 = arith.constant 0 : index
    %c0_56 = arith.constant 0 : index
    %199 = vector.load %arg7[%198, %c0_55, %c0_56] : memref<8x8x128xbf16, #tpu.memory_space<vmem>>, vector<1x8x128xbf16>
    %200 = vector.shape_cast %199 : vector<1x8x128xbf16> to vector<8x128xbf16>
    %201 = vector.shape_cast %197 : vector<8x128xbf16> to vector<1x8x128xbf16>
    tpu.vector_store %arg7[%198, %c0_55, %c0_56], %201 {strides = array<i32>} : memref<8x8x128xbf16, #tpu.memory_space<vmem>>, vector<1x8x128xbf16>,
    %c5_i32 = arith.constant 5 : i32
    %202 = arith.index_cast %c5_i32 : i32 to index
    %c0_57 = arith.constant 0 : index
    %c0_58 = arith.constant 0 : index
    %203 = vector.load %arg9[%202, %c0_57, %c0_58] : memref<8x8x384xf32, #tpu.memory_space<vmem>>, vector<1x8x384xf32>
    %204 = vector.shape_cast %203 : vector<1x8x384xf32> to vector<8x384xf32>
    %205 = arith.truncf %196 : vector<8x128xf32> to vector<8x128xbf16>
    %cst_59 = arith.constant dense<0.000000e+00> : vector<8x384xf32>
    %206 = tpu.matmul %205, %12, %cst_59 {dimension_numbers = #tpu.dot_dimension_numbers<[1], [0], [0], [1], [0, 0, 1, 1], [], []>} : vector<8x128xbf16>, vector<128x384xbf16>, vector<8x384xf32> -> vector<8x384xf32>
    %207 = vector.extract_strided_slice %204 {offsets = [0, 0], sizes = [8, 128], strides = [1, 1]} : vector<8x384xf32> to vector<8x128xf32>
    %208 = vector.extract_strided_slice %206 {offsets = [0, 0], sizes = [8, 128], strides = [1, 1]} : vector<8x384xf32> to vector<8x128xf32>
    %209 = arith.addf %207, %208 : vector<8x128xf32>
    %210 = arith.negf %209 : vector<8x128xf32>
    %211 = math.exp %210 : vector<8x128xf32>
    %cst_60 = arith.constant 1.000000e+00 : f32
    %212 = vector.broadcast %cst_60 : f32 to vector<8x128xf32>
    %213 = arith.addf %212, %211 : vector<8x128xf32>
    %214 = arith.divf %212, %213 : vector<8x128xf32>
    %215 = vector.extract_strided_slice %204 {offsets = [0, 128], sizes = [8, 128], strides = [1, 1]} : vector<8x384xf32> to vector<8x128xf32>
    %216 = vector.extract_strided_slice %206 {offsets = [0, 128], sizes = [8, 128], strides = [1, 1]} : vector<8x384xf32> to vector<8x128xf32>
    %217 = arith.addf %215, %216 : vector<8x128xf32>
    %218 = arith.negf %217 : vector<8x128xf32>
    %219 = math.exp %218 : vector<8x128xf32>
    %cst_61 = arith.constant 1.000000e+00 : f32
    %220 = vector.broadcast %cst_61 : f32 to vector<8x128xf32>
    %221 = arith.addf %220, %219 : vector<8x128xf32>
    %222 = arith.divf %220, %221 : vector<8x128xf32>
    %223 = vector.extract_strided_slice %204 {offsets = [0, 256], sizes = [8, 128], strides = [1, 1]} : vector<8x384xf32> to vector<8x128xf32>
    %224 = vector.extract_strided_slice %206 {offsets = [0, 256], sizes = [8, 128], strides = [1, 1]} : vector<8x384xf32> to vector<8x128xf32>
    %225 = arith.addf %224, %15 : vector<8x128xf32>
    %226 = arith.mulf %214, %225 : vector<8x128xf32>
    %227 = arith.addf %223, %226 : vector<8x128xf32>
    %228 = math.tanh %227 : vector<8x128xf32>
    %cst_62 = arith.constant 1.000000e+00 : f32
    %229 = vector.broadcast %cst_62 : f32 to vector<8x128xf32>
    %230 = arith.subf %229, %222 : vector<8x128xf32>
    %231 = arith.mulf %230, %228 : vector<8x128xf32>
    %232 = arith.mulf %222, %196 : vector<8x128xf32>
    %233 = arith.addf %231, %232 : vector<8x128xf32>
    %234 = arith.truncf %233 : vector<8x128xf32> to vector<8x128xbf16>
    %235 = arith.index_cast %c5_i32 : i32 to index
    %c0_63 = arith.constant 0 : index
    %c0_64 = arith.constant 0 : index
    %236 = vector.load %arg7[%235, %c0_63, %c0_64] : memref<8x8x128xbf16, #tpu.memory_space<vmem>>, vector<1x8x128xbf16>
    %237 = vector.shape_cast %236 : vector<1x8x128xbf16> to vector<8x128xbf16>
    %238 = vector.shape_cast %234 : vector<8x128xbf16> to vector<1x8x128xbf16>
    tpu.vector_store %arg7[%235, %c0_63, %c0_64], %238 {strides = array<i32>} : memref<8x8x128xbf16, #tpu.memory_space<vmem>>, vector<1x8x128xbf16>,
    %c6_i32 = arith.constant 6 : i32
    %239 = arith.index_cast %c6_i32 : i32 to index
    %c0_65 = arith.constant 0 : index
    %c0_66 = arith.constant 0 : index
    %240 = vector.load %arg9[%239, %c0_65, %c0_66] : memref<8x8x384xf32, #tpu.memory_space<vmem>>, vector<1x8x384xf32>
    %241 = vector.shape_cast %240 : vector<1x8x384xf32> to vector<8x384xf32>
    %242 = arith.truncf %233 : vector<8x128xf32> to vector<8x128xbf16>
    %cst_67 = arith.constant dense<0.000000e+00> : vector<8x384xf32>
    %243 = tpu.matmul %242, %12, %cst_67 {dimension_numbers = #tpu.dot_dimension_numbers<[1], [0], [0], [1], [0, 0, 1, 1], [], []>} : vector<8x128xbf16>, vector<128x384xbf16>, vector<8x384xf32> -> vector<8x384xf32>
    %244 = vector.extract_strided_slice %241 {offsets = [0, 0], sizes = [8, 128], strides = [1, 1]} : vector<8x384xf32> to vector<8x128xf32>
    %245 = vector.extract_strided_slice %243 {offsets = [0, 0], sizes = [8, 128], strides = [1, 1]} : vector<8x384xf32> to vector<8x128xf32>
    %246 = arith.addf %244, %245 : vector<8x128xf32>
    %247 = arith.negf %246 : vector<8x128xf32>
    %248 = math.exp %247 : vector<8x128xf32>
    %cst_68 = arith.constant 1.000000e+00 : f32
    %249 = vector.broadcast %cst_68 : f32 to vector<8x128xf32>
    %250 = arith.addf %249, %248 : vector<8x128xf32>
    %251 = arith.divf %249, %250 : vector<8x128xf32>
    %252 = vector.extract_strided_slice %241 {offsets = [0, 128], sizes = [8, 128], strides = [1, 1]} : vector<8x384xf32> to vector<8x128xf32>
    %253 = vector.extract_strided_slice %243 {offsets = [0, 128], sizes = [8, 128], strides = [1, 1]} : vector<8x384xf32> to vector<8x128xf32>
    %254 = arith.addf %252, %253 : vector<8x128xf32>
    %255 = arith.negf %254 : vector<8x128xf32>
    %256 = math.exp %255 : vector<8x128xf32>
    %cst_69 = arith.constant 1.000000e+00 : f32
    %257 = vector.broadcast %cst_69 : f32 to vector<8x128xf32>
    %258 = arith.addf %257, %256 : vector<8x128xf32>
    %259 = arith.divf %257, %258 : vector<8x128xf32>
    %260 = vector.extract_strided_slice %241 {offsets = [0, 256], sizes = [8, 128], strides = [1, 1]} : vector<8x384xf32> to vector<8x128xf32>
    %261 = vector.extract_strided_slice %243 {offsets = [0, 256], sizes = [8, 128], strides = [1, 1]} : vector<8x384xf32> to vector<8x128xf32>
    %262 = arith.addf %261, %15 : vector<8x128xf32>
    %263 = arith.mulf %251, %262 : vector<8x128xf32>
    %264 = arith.addf %260, %263 : vector<8x128xf32>
    %265 = math.tanh %264 : vector<8x128xf32>
    %cst_70 = arith.constant 1.000000e+00 : f32
    %266 = vector.broadcast %cst_70 : f32 to vector<8x128xf32>
    %267 = arith.subf %266, %259 : vector<8x128xf32>
    %268 = arith.mulf %267, %265 : vector<8x128xf32>
    %269 = arith.mulf %259, %233 : vector<8x128xf32>
    %270 = arith.addf %268, %269 : vector<8x128xf32>
    %271 = arith.truncf %270 : vector<8x128xf32> to vector<8x128xbf16>
    %272 = arith.index_cast %c6_i32 : i32 to index
    %c0_71 = arith.constant 0 : index
    %c0_72 = arith.constant 0 : index
    %273 = vector.load %arg7[%272, %c0_71, %c0_72] : memref<8x8x128xbf16, #tpu.memory_space<vmem>>, vector<1x8x128xbf16>
    %274 = vector.shape_cast %273 : vector<1x8x128xbf16> to vector<8x128xbf16>
    %275 = vector.shape_cast %271 : vector<8x128xbf16> to vector<1x8x128xbf16>
    tpu.vector_store %arg7[%272, %c0_71, %c0_72], %275 {strides = array<i32>} : memref<8x8x128xbf16, #tpu.memory_space<vmem>>, vector<1x8x128xbf16>,
    %c7_i32 = arith.constant 7 : i32
    %276 = arith.index_cast %c7_i32 : i32 to index
    %c0_73 = arith.constant 0 : index
    %c0_74 = arith.constant 0 : index
    %277 = vector.load %arg9[%276, %c0_73, %c0_74] : memref<8x8x384xf32, #tpu.memory_space<vmem>>, vector<1x8x384xf32>
    %278 = vector.shape_cast %277 : vector<1x8x384xf32> to vector<8x384xf32>
    %279 = arith.truncf %270 : vector<8x128xf32> to vector<8x128xbf16>
    %cst_75 = arith.constant dense<0.000000e+00> : vector<8x384xf32>
    %280 = tpu.matmul %279, %12, %cst_75 {dimension_numbers = #tpu.dot_dimension_numbers<[1], [0], [0], [1], [0, 0, 1, 1], [], []>} : vector<8x128xbf16>, vector<128x384xbf16>, vector<8x384xf32> -> vector<8x384xf32>
    %281 = vector.extract_strided_slice %278 {offsets = [0, 0], sizes = [8, 128], strides = [1, 1]} : vector<8x384xf32> to vector<8x128xf32>
    %282 = vector.extract_strided_slice %280 {offsets = [0, 0], sizes = [8, 128], strides = [1, 1]} : vector<8x384xf32> to vector<8x128xf32>
    %283 = arith.addf %281, %282 : vector<8x128xf32>
    %284 = arith.negf %283 : vector<8x128xf32>
    %285 = math.exp %284 : vector<8x128xf32>
    %cst_76 = arith.constant 1.000000e+00 : f32
    %286 = vector.broadcast %cst_76 : f32 to vector<8x128xf32>
    %287 = arith.addf %286, %285 : vector<8x128xf32>
    %288 = arith.divf %286, %287 : vector<8x128xf32>
    %289 = vector.extract_strided_slice %278 {offsets = [0, 128], sizes = [8, 128], strides = [1, 1]} : vector<8x384xf32> to vector<8x128xf32>
    %290 = vector.extract_strided_slice %280 {offsets = [0, 128], sizes = [8, 128], strides = [1, 1]} : vector<8x384xf32> to vector<8x128xf32>
    %291 = arith.addf %289, %290 : vector<8x128xf32>
    %292 = arith.negf %291 : vector<8x128xf32>
    %293 = math.exp %292 : vector<8x128xf32>
    %cst_77 = arith.constant 1.000000e+00 : f32
    %294 = vector.broadcast %cst_77 : f32 to vector<8x128xf32>
    %295 = arith.addf %294, %293 : vector<8x128xf32>
    %296 = arith.divf %294, %295 : vector<8x128xf32>
    %297 = vector.extract_strided_slice %278 {offsets = [0, 256], sizes = [8, 128], strides = [1, 1]} : vector<8x384xf32> to vector<8x128xf32>
    %298 = vector.extract_strided_slice %280 {offsets = [0, 256], sizes = [8, 128], strides = [1, 1]} : vector<8x384xf32> to vector<8x128xf32>
    %299 = arith.addf %298, %15 : vector<8x128xf32>
    %300 = arith.mulf %288, %299 : vector<8x128xf32>
    %301 = arith.addf %297, %300 : vector<8x128xf32>
    %302 = math.tanh %301 : vector<8x128xf32>
    %cst_78 = arith.constant 1.000000e+00 : f32
    %303 = vector.broadcast %cst_78 : f32 to vector<8x128xf32>
    %304 = arith.subf %303, %296 : vector<8x128xf32>
    %305 = arith.mulf %304, %302 : vector<8x128xf32>
    %306 = arith.mulf %296, %270 : vector<8x128xf32>
    %307 = arith.addf %305, %306 : vector<8x128xf32>
    %308 = arith.truncf %307 : vector<8x128xf32> to vector<8x128xbf16>
    %309 = arith.index_cast %c7_i32 : i32 to index
    %c0_79 = arith.constant 0 : index
    %c0_80 = arith.constant 0 : index
    %310 = vector.load %arg7[%309, %c0_79, %c0_80] : memref<8x8x128xbf16, #tpu.memory_space<vmem>>, vector<1x8x128xbf16>
    %311 = vector.shape_cast %310 : vector<1x8x128xbf16> to vector<8x128xbf16>
    %312 = vector.shape_cast %308 : vector<8x128xbf16> to vector<1x8x128xbf16>
    tpu.vector_store %arg7[%309, %c0_79, %c0_80], %312 {strides = array<i32>} : memref<8x8x128xbf16, #tpu.memory_space<vmem>>, vector<1x8x128xbf16>,
    %c8_i32 = arith.constant 8 : i32
    %c0_81 = arith.constant 0 : index
    %c0_82 = arith.constant 0 : index
    %313 = vector.load %arg8[%c0_81, %c0_82] : memref<8x128xf32, #tpu.memory_space<vmem>>, vector<8x128xf32>
    tpu.vector_store %arg8[%c0_81, %c0_82], %307 {strides = array<i32>} : memref<8x128xf32, #tpu.memory_space<vmem>>, vector<8x128xf32>,
    return
  }
  func.func @transform_0(%arg0: i32, %arg1: i32) -> (i32, i32, i32) {
    %c0_i32 = arith.constant 0 : i32
    %c0_i32_0 = arith.constant 0 : i32
    return %arg1, %arg0, %c0_i32 : i32, i32, i32
  }
  func.func @transform_1(%arg0: i32, %arg1: i32) -> (i32, i32) {
    %c0_i32 = arith.constant 0 : i32
    %c0_i32_0 = arith.constant 0 : i32
    %c0_i32_1 = arith.constant 0 : i32
    return %c0_i32, %c0_i32_0 : i32, i32
  }
  func.func @transform_2(%arg0: i32, %arg1: i32) -> (i32, i32) {
    %c0_i32 = arith.constant 0 : i32
    %c0_i32_0 = arith.constant 0 : i32
    %c0_i32_1 = arith.constant 0 : i32
    return %c0_i32, %c0_i32_0 : i32, i32
  }
  func.func @transform_3(%arg0: i32, %arg1: i32) -> (i32, i32) {
    %c0_i32 = arith.constant 0 : i32
    %c0_i32_0 = arith.constant 0 : i32
    %c0_i32_1 = arith.constant 0 : i32
    return %c0_i32, %c0_i32_0 : i32, i32
  }
  func.func @transform_4(%arg0: i32, %arg1: i32) -> (i32, i32) {
    %c0_i32 = arith.constant 0 : i32
    %c0_i32_0 = arith.constant 0 : i32
    %c0_i32_1 = arith.constant 0 : i32
    return %c0_i32, %c0_i32_0 : i32, i32
  }
  func.func @transform_5(%arg0: i32, %arg1: i32) -> (i32, i32, i32) {
    %c0_i32 = arith.constant 0 : i32
    %c0_i32_0 = arith.constant 0 : i32
    return %arg1, %arg0, %c0_i32 : i32, i32, i32
  }
}

</mosaic_0001>

<llo_original>
// kernel: seq2seq_encoder_forward.1
$region0: #{seq2seq_encoder_forward.1}
  #allocation0 [shape = 'u32[]', space=smem, size = 0x4, offset = 0x4, fixed_abs, tag = 'smem constant byte address 0x4 - core index']
  #allocation1 [shape = 'u32[144,128]{1,0:T(1,128)}', space=vmem, size = 0x12000, scoped, tag = 'internal scratch']
  #allocation2 [shape = 'f32[8,128]{1,0:T(8,128)}', space=vmem, size = 0x1000, scoped, tag = 'scratch operand']
  #allocation3 [shape = 'f32[8,8,384]{2,1,0:T(8,128)}', space=vmem, size = 0x18000, scoped, tag = 'scratch operand']
  %s0 = inlined_call_operand.vmem [shape: bf16[8,8,128], index: 0, kind: input, shape index: {}]
  %s1 = inlined_call_operand.vmem [shape: bf16[128,384], index: 1, kind: input, shape index: {}]
  %s2 = inlined_call_operand.vmem [shape: bf16[128,384], index: 2, kind: input, shape index: {}]
  %s3 = inlined_call_operand.vmem [shape: f32[1,384], index: 3, kind: input, shape index: {}]
  %s4 = inlined_call_operand.vmem [shape: f32[1,128], index: 4, kind: input, shape index: {}]
  %s5 = inlined_call_operand.vmem [shape: bf16[8,8,128], index: 5, kind: output, shape index: {}]
  %s6 = sld [smem:[#allocation0]]
  $region34: #{seq2seq_encoder_forward.1} parent=0
    _
  %s8 = ssub.s32 1, %s6
  %s9 = scalar_select 0, %s8, %s6
  // Predicated region
  $region2: #{seq2seq_encoder_forward.1} parent=0 // pred_check
    _
  $region3: #{seq2seq_encoder_forward.1} parent=0 // pred_check_branch
    %11 = sbr.rel (0) target = $region5
  $region4: #{seq2seq_encoder_forward.1} parent=0 // pred_region
    _
  $region5: #{seq2seq_encoder_forward.1} parent=0 // pred_fallthru
    _
  // Predicated region
  $region6: #{seq2seq_encoder_forward.1} parent=0 // pred_check
    _
  $region7: #{seq2seq_encoder_forward.1} parent=0 // pred_check_branch
    %13 = sbr.rel (0) target = $region9
  $region8: #{seq2seq_encoder_forward.1} parent=0 // pred_region
    _
  $region9: #{seq2seq_encoder_forward.1} parent=0 // pred_fallthru
    _
  // Predicated region
  $region10: #{seq2seq_encoder_forward.1} parent=0 // pred_check
    _
  $region11: #{seq2seq_encoder_forward.1} parent=0 // pred_check_branch
    %15 = sbr.rel (0) target = $region13
  $region12: #{seq2seq_encoder_forward.1} parent=0 // pred_region
    _
  $region13: #{seq2seq_encoder_forward.1} parent=0 // pred_fallthru
    _
  // Predicated region
  $region14: #{seq2seq_encoder_forward.1} parent=0 // pred_check
    _
  $region15: #{seq2seq_encoder_forward.1} parent=0 // pred_check_branch
    %17 = sbr.rel (0) target = $region17
  $region16: #{seq2seq_encoder_forward.1} parent=0 // pred_region
    _
  $region17: #{seq2seq_encoder_forward.1} parent=0 // pred_fallthru
    _
  // Predicated region
  $region18: #{seq2seq_encoder_forward.1} parent=0 // pred_check
    _
  $region19: #{seq2seq_encoder_forward.1} parent=0 // pred_check_branch
    %19 = sbr.rel (0) target = $region21
  $region20: #{seq2seq_encoder_forward.1} parent=0 // pred_region
    _
  $region21: #{seq2seq_encoder_forward.1} parent=0 // pred_fallthru
    _
  %p21 = scmp.eq.s32.totalorder 0, 0
  // Predicated region
  $region22: #{seq2seq_encoder_forward.1} parent=0 // pred_check
    %p22 = pneg %p21
  $region23: #{seq2seq_encoder_forward.1} parent=0 // pred_check_branch
    %24 = sbr.rel (%p22) target = $region25
  $region24: #{seq2seq_encoder_forward.1} parent=0 // pred_region
    %25 = vst [vmem:[#allocation2] sm:$0xff] 0.0
  $region25: #{seq2seq_encoder_forward.1} parent=0 // pred_fallthru
    _
  %v26 = vld [vmem:[%s0] sm:$0xf]
  %v27 = vld [vmem:[%s0 + $0x4] sm:$0xf]
  %v28 = vld [vmem:[%s0 + $0x8] sm:$0xf]
  %v29 = vld [vmem:[%s0 + $0xc] sm:$0xf]
  %v30 = vld [vmem:[%s0 + $0x10] sm:$0xf]
  %v31 = vld [vmem:[%s0 + $0x14] sm:$0xf]
  %v32 = vld [vmem:[%s0 + $0x18] sm:$0xf]
  %v33 = vld [vmem:[%s0 + $0x1c] sm:$0xf]
  %v34 = vld [vmem:[%s1] sm:$0xff]
  %v35 = vld [vmem:[%s1 + $0x8] sm:$0xf]
  %v36 = vld [vmem:[%s1 + $0xc] sm:$0xff]
  %v37 = vld [vmem:[%s1 + $0x14] sm:$0xf]
  %v38 = vld [vmem:[%s1 + $0x18] sm:$0xff]
  %v39 = vld [vmem:[%s1 + $0x20] sm:$0xf]
  %v40 = vld [vmem:[%s1 + $0x24] sm:$0xff]
  %v41 = vld [vmem:[%s1 + $0x2c] sm:$0xf]
  %v42 = vld [vmem:[%s1 + $0x30] sm:$0xff]
  %v43 = vld [vmem:[%s1 + $0x38] sm:$0xf]
  %v44 = vld [vmem:[%s1 + $0x3c] sm:$0xff]
  %v45 = vld [vmem:[%s1 + $0x44] sm:$0xf]
  %v46 = vld [vmem:[%s1 + $0x48] sm:$0xff]
  %v47 = vld [vmem:[%s1 + $0x50] sm:$0xf]
  %v48 = vld [vmem:[%s1 + $0x54] sm:$0xff]
  %v49 = vld [vmem:[%s1 + $0x5c] sm:$0xf]
  %v50 = vld [vmem:[%s1 + $0x60] sm:$0xff]
  %v51 = vld [vmem:[%s1 + $0x68] sm:$0xf]
  %v52 = vld [vmem:[%s1 + $0x6c] sm:$0xff]
  %v53 = vld [vmem:[%s1 + $0x74] sm:$0xf]
  %v54 = vld [vmem:[%s1 + $0x78] sm:$0xff]
  %v55 = vld [vmem:[%s1 + $0x80] sm:$0xf]
  %v56 = vld [vmem:[%s1 + $0x84] sm:$0xff]
  %v57 = vld [vmem:[%s1 + $0x8c] sm:$0xf]
  %v58 = vld [vmem:[%s1 + $0x90] sm:$0xff]
  %v59 = vld [vmem:[%s1 + $0x98] sm:$0xf]
  %v60 = vld [vmem:[%s1 + $0x9c] sm:$0xff]
  %v61 = vld [vmem:[%s1 + $0xa4] sm:$0xf]
  %v62 = vld [vmem:[%s1 + $0xa8] sm:$0xff]
  %v63 = vld [vmem:[%s1 + $0xb0] sm:$0xf]
  %v64 = vld [vmem:[%s1 + $0xb4] sm:$0xff]
  %v65 = vld [vmem:[%s1 + $0xbc] sm:$0xf]
  %v66 = vld [vmem:[%s3] sm:$0x7]
  %v68 = vlaneseq
  %v69 = vshrl.u32 %v68, 7
  %v70 = vsub.s32 0, %v69
  %v71 = vrot.slane %v66, %v70
  %v72 = vlaneseq
  %v73 = vshrl.u32 %v72, 7
  %v74 = vsub.s32 1, %v73
  %v75 = vrot.slane %v66, %v74
  %v76 = vlaneseq
  %v77 = vshrl.u32 %v76, 7
  %v78 = vsub.s32 2, %v77
  %v79 = vrot.slane %v66, %v78
  %v91 = vunpack.c.l.b16 %v26
  %v92 = vunpack.c.l.b16 %v27
  %v93 = vunpack.c.l.b16 %v28
  %v94 = vunpack.c.l.b16 %v29
  %v95 = vunpack.c.l.b16 %v30
  %v96 = vunpack.c.l.b16 %v31
  %v97 = vunpack.c.l.b16 %v32
  %v98 = vunpack.c.l.b16 %v33
  %v99 = vpack.c.b16 %v92, %v91
  %v100 = vpack.c.b16 %v94, %v93
  %v101 = vpack.c.b16 %v96, %v95
  %v102 = vpack.c.b16 %v98, %v97
  %v139 = vunpack.c.l.b16 %v34
  %v140 = vunpack.c.h.b16 %v34
  %v141 = vunpack.c.l.b16 %v35
  %v142 = vunpack.c.l.b16 %v36
  %v143 = vunpack.c.h.b16 %v36
  %v144 = vunpack.c.l.b16 %v37
  %v145 = vunpack.c.l.b16 %v38
  %v146 = vunpack.c.h.b16 %v38
  %v147 = vunpack.c.l.b16 %v39
  %v148 = vunpack.c.l.b16 %v40
  %v149 = vunpack.c.h.b16 %v40
  %v150 = vunpack.c.l.b16 %v41
  %v151 = vunpack.c.l.b16 %v42
  %v152 = vunpack.c.h.b16 %v42
  %v153 = vunpack.c.l.b16 %v43
  %v154 = vunpack.c.l.b16 %v44
  %v155 = vunpack.c.h.b16 %v44
  %v156 = vunpack.c.l.b16 %v45
  %v157 = vunpack.c.l.b16 %v46
  %v158 = vunpack.c.h.b16 %v46
  %v159 = vunpack.c.l.b16 %v47
  %v160 = vunpack.c.l.b16 %v48
  %v161 = vunpack.c.h.b16 %v48
  %v162 = vunpack.c.l.b16 %v49
  %v163 = vunpack.c.l.b16 %v50
  %v164 = vunpack.c.h.b16 %v50
  %v165 = vunpack.c.l.b16 %v51
  %v166 = vunpack.c.l.b16 %v52
  %v167 = vunpack.c.h.b16 %v52
  %v168 = vunpack.c.l.b16 %v53
  %v169 = vunpack.c.l.b16 %v54
  %v170 = vunpack.c.h.b16 %v54
  %v171 = vunpack.c.l.b16 %v55
  %v172 = vunpack.c.l.b16 %v56
  %v173 = vunpack.c.h.b16 %v56
  %v174 = vunpack.c.l.b16 %v57
  %v175 = vunpack.c.l.b16 %v58
  %v176 = vunpack.c.h.b16 %v58
  %v177 = vunpack.c.l.b16 %v59
  %v178 = vunpack.c.l.b16 %v60
  %v179 = vunpack.c.h.b16 %v60
  %v180 = vunpack.c.l.b16 %v61
  %v181 = vunpack.c.l.b16 %v62
  %v182 = vunpack.c.h.b16 %v62
  %v183 = vunpack.c.l.b16 %v63
  %v184 = vunpack.c.l.b16 %v64
  %v185 = vunpack.c.h.b16 %v64
  %v186 = vunpack.c.l.b16 %v65
  %v187 = vpack.c.b16 %v142, %v139
  %v188 = vpack.c.b16 %v143, %v140
  %v189 = vpack.c.b16 %v144, %v141
  %v190 = vpack.c.b16 %v148, %v145
  %v191 = vpack.c.b16 %v149, %v146
  %v192 = vpack.c.b16 %v150, %v147
  %v193 = vpack.c.b16 %v154, %v151
  %v194 = vpack.c.b16 %v155, %v152
  %v195 = vpack.c.b16 %v156, %v153
  %v196 = vpack.c.b16 %v160, %v157
  %v197 = vpack.c.b16 %v161, %v158
  %v198 = vpack.c.b16 %v162, %v159
  %v199 = vpack.c.b16 %v166, %v163
  %v200 = vpack.c.b16 %v167, %v164
  %v201 = vpack.c.b16 %v168, %v165
  %v202 = vpack.c.b16 %v172, %v169
  %v203 = vpack.c.b16 %v173, %v170
  %v204 = vpack.c.b16 %v174, %v171
  %v205 = vpack.c.b16 %v178, %v175
  %v206 = vpack.c.b16 %v179, %v176
  %v207 = vpack.c.b16 %v180, %v177
  %v208 = vpack.c.b16 %v184, %v181
  %v209 = vpack.c.b16 %v185, %v182
  %v210 = vpack.c.b16 %v186, %v183
  %235 = vmatprep.subr.bf16.mxu0 %v209
  %236 = vmatpush1.bf16.msra.mxu0 %v208
  %237 = vmatprep.subr.bf16.mxu0 %v206
  %238 = vmatpush1.bf16.msra.mxu0 %v205
  %239 = vmatprep.subr.bf16.mxu0 %v203
  %240 = vmatpush1.bf16.msra.mxu0 %v202
  %241 = vmatprep.subr.bf16.mxu0 %v200
  %242 = vmatpush1.bf16.msra.mxu0 %v199
  %243 = vmatprep.subr.bf16.mxu0 %v197
  %244 = vmatpush1.bf16.msra.mxu0 %v196
  %245 = vmatprep.subr.bf16.mxu0 %v194
  %246 = vmatpush1.bf16.msra.mxu0 %v193
  %247 = vmatprep.subr.bf16.mxu0 %v191
  %248 = vmatpush1.bf16.msra.mxu0 %v190
  %249 = vmatprep.subr.bf16.mxu0 %v188
  %250 = vmatpush1.bf16.msra.mxu0 %v187
  %251 = vmatprep.subr.bf16.mxu0 0
  %252 = vmatpush2.bf16.msra.mxu0 0
  %253 = vmatprep.subr.bf16.mxu0 0
  %254 = vmatpush2.bf16.msra.mxu0 0
  %255 = vmatprep.subr.bf16.mxu0 0
  %256 = vmatpush2.bf16.msra.mxu0 0
  %257 = vmatprep.subr.bf16.mxu0 0
  %258 = vmatpush2.bf16.msra.mxu0 0
  %259 = vmatprep.subr.bf16.mxu0 0
  %260 = vmatpush2.bf16.msra.mxu0 0
  %261 = vmatprep.subr.bf16.mxu0 0
  %262 = vmatpush2.bf16.msra.mxu0 0
  %263 = vmatprep.subr.bf16.mxu0 0
  %264 = vmatpush2.bf16.msra.mxu0 0
  %265 = vmatprep.subr.bf16.mxu0 0
  %266 = vmatpush2.bf16.msra.mxu0 0
  %267 = vmatprep.mubr.bf16.mxu0 0
  %268 = vmatmul.mubr.bf16.gmra.mxu0 %v99
  %v269 = vpop.f32.mrf.mxu0
  %v270 = vadd.f32 %v71, %v269
  %v271 = vpop.f32.mrf.mxu0
  %v272 = vadd.f32 %v75, %v271
  %v273 = vpop.f32.mrf.mxu0
  %v274 = vadd.f32 %v71, %v273
  %v275 = vpop.f32.mrf.mxu0
  %v276 = vadd.f32 %v75, %v275
  %277 = vmatprep.mubr.bf16.mxu0 0
  %278 = vmatmul.mubr.bf16.gmra.mxu0 %v100
  %v279 = vpop.f32.mrf.mxu0
  %v280 = vadd.f32 %v71, %v279
  %v281 = vpop.f32.mrf.mxu0
  %v282 = vadd.f32 %v75, %v281
  %v283 = vpop.f32.mrf.mxu0
  %v284 = vadd.f32 %v71, %v283
  %v285 = vpop.f32.mrf.mxu0
  %v286 = vadd.f32 %v75, %v285
  %287 = vmatprep.mubr.bf16.mxu0 0
  %288 = vmatmul.mubr.bf16.gmra.mxu0 %v101
  %v289 = vpop.f32.mrf.mxu0
  %v290 = vadd.f32 %v71, %v289
  %v291 = vpop.f32.mrf.mxu0
  %v292 = vadd.f32 %v75, %v291
  %v293 = vpop.f32.mrf.mxu0
  %v294 = vadd.f32 %v71, %v293
  %v295 = vpop.f32.mrf.mxu0
  %v296 = vadd.f32 %v75, %v295
  %297 = vmatprep.mubr.bf16.mxu0 0
  %298 = vmatmul.mubr.bf16.gmra.mxu0 %v102
  %v299 = vpop.f32.mrf.mxu0
  %v300 = vadd.f32 %v71, %v299
  %v301 = vpop.f32.mrf.mxu0
  %v302 = vadd.f32 %v75, %v301
  %v303 = vpop.f32.mrf.mxu0
  %v304 = vadd.f32 %v71, %v303
  %v305 = vpop.f32.mrf.mxu0
  %v306 = vadd.f32 %v75, %v305
  %307 = vdwg.mxu0
  %308 = vmatprep.subr.bf16.mxu0 0
  %309 = vmatpush1.bf16.msra.mxu0 %v210
  %310 = vmatprep.subr.bf16.mxu0 0
  %311 = vmatpush1.bf16.msra.mxu0 %v207
  %312 = vmatprep.subr.bf16.mxu0 0
  %313 = vmatpush1.bf16.msra.mxu0 %v204
  %314 = vmatprep.subr.bf16.mxu0 0
  %315 = vmatpush1.bf16.msra.mxu0 %v201
  %316 = vmatprep.subr.bf16.mxu0 0
  %317 = vmatpush1.bf16.msra.mxu0 %v198
  %318 = vmatprep.subr.bf16.mxu0 0
  %319 = vmatpush1.bf16.msra.mxu0 %v195
  %320 = vmatprep.subr.bf16.mxu0 0
  %321 = vmatpush1.bf16.msra.mxu0 %v192
  %322 = vmatprep.subr.bf16.mxu0 0
  %323 = vmatpush1.bf16.msra.mxu0 %v189
  %324 = vmatprep.subr.bf16.mxu0 0
  %325 = vmatpush2.bf16.msra.mxu0 0
  %326 = vmatprep.subr.bf16.mxu0 0
  %327 = vmatpush2.bf16.msra.mxu0 0
  %328 = vmatprep.subr.bf16.mxu0 0
  %329 = vmatpush2.bf16.msra.mxu0 0
  %330 = vmatprep.subr.bf16.mxu0 0
  %331 = vmatpush2.bf16.msra.mxu0 0
  %332 = vmatprep.subr.bf16.mxu0 0
  %333 = vmatpush2.bf16.msra.mxu0 0
  %334 = vmatprep.subr.bf16.mxu0 0
  %335 = vmatpush2.bf16.msra.mxu0 0
  %336 = vmatprep.subr.bf16.mxu0 0
  %337 = vmatpush2.bf16.msra.mxu0 0
  %338 = vmatprep.subr.bf16.mxu0 0
  %339 = vmatpush2.bf16.msra.mxu0 0
  %340 = vmatprep.mubr.bf16.mxu0 0
  %341 = vmatmul.mubr.bf16.gmra.mxu0 %v99
  %v342 = vpop.f32.mrf.mxu0
  %v343 = vadd.f32 %v79, %v342
  %v344 = vpop.f32.mrf.mxu0
  %v345 = vpop.f32.mrf.mxu0
  %v346 = vadd.f32 %v79, %v345
  %v347 = vpop.f32.mrf.mxu0
  %348 = vmatprep.mubr.bf16.mxu0 0
  %349 = vmatmul.mubr.bf16.gmra.mxu0 %v100
  %v350 = vpop.f32.mrf.mxu0
  %v351 = vadd.f32 %v79, %v350
  %v352 = vpop.f32.mrf.mxu0
  %v353 = vpop.f32.mrf.mxu0
  %v354 = vadd.f32 %v79, %v353
  %v355 = vpop.f32.mrf.mxu0
  %356 = vmatprep.mubr.bf16.mxu0 0
  %357 = vmatmul.mubr.bf16.gmra.mxu0 %v101
  %v358 = vpop.f32.mrf.mxu0
  %v359 = vadd.f32 %v79, %v358
  %v360 = vpop.f32.mrf.mxu0
  %v361 = vpop.f32.mrf.mxu0
  %v362 = vadd.f32 %v79, %v361
  %v363 = vpop.f32.mrf.mxu0
  %364 = vmatprep.mubr.bf16.mxu0 0
  %365 = vmatmul.mubr.bf16.gmra.mxu0 %v102
  %v366 = vpop.f32.mrf.mxu0
  %v367 = vadd.f32 %v79, %v366
  %v368 = vpop.f32.mrf.mxu0
  %v369 = vpop.f32.mrf.mxu0
  %v370 = vadd.f32 %v79, %v369
  %v371 = vpop.f32.mrf.mxu0
  %372 = vdwg.mxu0
  %373 = vst [vmem:[#allocation3] sm:$0xff] %v270
  %374 = vst [vmem:[#allocation3 + $0x8] sm:$0xff] %v272
  %375 = vst [vmem:[#allocation3 + $0x10] sm:$0xff] %v343
  %376 = vst [vmem:[#allocation3 + $0x18] sm:$0xff] %v274
  %377 = vst [vmem:[#allocation3 + $0x20] sm:$0xff] %v276
  %378 = vst [vmem:[#allocation3 + $0x28] sm:$0xff] %v346
  %379 = vst [vmem:[#allocation3 + $0x30] sm:$0xff] %v280
  %380 = vst [vmem:[#allocation3 + $0x38] sm:$0xff] %v282
  %381 = vst [vmem:[#allocation3 + $0x40] sm:$0xff] %v351
  %382 = vst [vmem:[#allocation3 + $0x48] sm:$0xff] %v284
  %383 = vst [vmem:[#allocation3 + $0x50] sm:$0xff] %v286
  %384 = vst [vmem:[#allocation3 + $0x58] sm:$0xff] %v354
  %385 = vst [vmem:[#allocation3 + $0x60] sm:$0xff] %v290
  %386 = vst [vmem:[#allocation3 + $0x68] sm:$0xff] %v292
  %387 = vst [vmem:[#allocation3 + $0x70] sm:$0xff] %v359
  %388 = vst [vmem:[#allocation3 + $0x78] sm:$0xff] %v294
  %389 = vst [vmem:[#allocation3 + $0x80] sm:$0xff] %v296
  %390 = vst [vmem:[#allocation3 + $0x88] sm:$0xff] %v362
  %391 = vst [vmem:[#allocation3 + $0x90] sm:$0xff] %v300
  %392 = vst [vmem:[#allocation3 + $0x98] sm:$0xff] %v302
  %393 = vst [vmem:[#allocation3 + $0xa0] sm:$0xff] %v367
  %394 = vst [vmem:[#allocation3 + $0xa8] sm:$0xff] %v304
  %395 = vst [vmem:[#allocation3 + $0xb0] sm:$0xff] %v306
  %396 = vst [vmem:[#allocation3 + $0xb8] sm:$0xff] %v370
  %v397 = vld [vmem:[%s2] sm:$0xff]
  %v398 = vld [vmem:[%s2 + $0x8] sm:$0xf]
  %v399 = vld [vmem:[%s2 + $0xc] sm:$0xff]
  %v400 = vld [vmem:[%s2 + $0x14] sm:$0xf]
  %v401 = vld [vmem:[%s2 + $0x18] sm:$0xff]
  %v402 = vld [vmem:[%s2 + $0x20] sm:$0xf]
  %v403 = vld [vmem:[%s2 + $0x24] sm:$0xff]
  %v404 = vld [vmem:[%s2 + $0x2c] sm:$0xf]
  %v405 = vld [vmem:[%s2 + $0x30] sm:$0xff]
  %v406 = vld [vmem:[%s2 + $0x38] sm:$0xf]
  %v407 = vld [vmem:[%s2 + $0x3c] sm:$0xff]
  %v408 = vld [vmem:[%s2 + $0x44] sm:$0xf]
  %v409 = vld [vmem:[%s2 + $0x48] sm:$0xff]
  %v410 = vld [vmem:[%s2 + $0x50] sm:$0xf]
  %v411 = vld [vmem:[%s2 + $0x54] sm:$0xff]
  %v412 = vld [vmem:[%s2 + $0x5c] sm:$0xf]
  %v413 = vld [vmem:[%s2 + $0x60] sm:$0xff]
  %v414 = vld [vmem:[%s2 + $0x68] sm:$0xf]
  %v415 = vld [vmem:[%s2 + $0x6c] sm:$0xff]
  %v416 = vld [vmem:[%s2 + $0x74] sm:$0xf]
  %v417 = vld [vmem:[%s2 + $0x78] sm:$0xff]
  %v418 = vld [vmem:[%s2 + $0x80] sm:$0xf]
  %v419 = vld [vmem:[%s2 + $0x84] sm:$0xff]
  %v420 = vld [vmem:[%s2 + $0x8c] sm:$0xf]
  %v421 = vld [vmem:[%s2 + $0x90] sm:$0xff]
  %v422 = vld [vmem:[%s2 + $0x98] sm:$0xf]
  %v423 = vld [vmem:[%s2 + $0x9c] sm:$0xff]
  %v424 = vld [vmem:[%s2 + $0xa4] sm:$0xf]
  %v425 = vld [vmem:[%s2 + $0xa8] sm:$0xff]
  %v426 = vld [vmem:[%s2 + $0xb0] sm:$0xf]
  %v427 = vld [vmem:[%s2 + $0xb4] sm:$0xff]
  %v428 = vld [vmem:[%s2 + $0xbc] sm:$0xf]
  %v429 = vld [vmem:[%s4] sm:$0x1]
  %v431 = vlaneseq
  %v432 = vshrl.u32 %v431, 7
  %v433 = vsub.s32 0, %v432
  %v434 = vrot.slane %v429, %v433
  %v436 = vld [vmem:[#allocation2] sm:$0xff]
  %v437 = vld [vmem:[#allocation3] sm:$0xff]
  %v438 = vld [vmem:[#allocation3 + $0x8] sm:$0xff]
  %v439 = vld [vmem:[#allocation3 + $0x10] sm:$0xff]
  %v440 = vpack.c.bf16 %v436, %v436
  %v473 = vunpack.c.l.b16 %v397
  %v474 = vunpack.c.h.b16 %v397
  %v475 = vunpack.c.l.b16 %v398
  %v476 = vunpack.c.l.b16 %v399
  %v477 = vunpack.c.h.b16 %v399
  %v478 = vunpack.c.l.b16 %v400
  %v479 = vunpack.c.l.b16 %v401
  %v480 = vunpack.c.h.b16 %v401
  %v481 = vunpack.c.l.b16 %v402
  %v482 = vunpack.c.l.b16 %v403
  %v483 = vunpack.c.h.b16 %v403
  %v484 = vunpack.c.l.b16 %v404
  %v485 = vunpack.c.l.b16 %v405
  %v486 = vunpack.c.h.b16 %v405
  %v487 = vunpack.c.l.b16 %v406
  %v488 = vunpack.c.l.b16 %v407
  %v489 = vunpack.c.h.b16 %v407
  %v490 = vunpack.c.l.b16 %v408
  %v491 = vunpack.c.l.b16 %v409
  %v492 = vunpack.c.h.b16 %v409
  %v493 = vunpack.c.l.b16 %v410
  %v494 = vunpack.c.l.b16 %v411
  %v495 = vunpack.c.h.b16 %v411
  %v496 = vunpack.c.l.b16 %v412
  %v497 = vunpack.c.l.b16 %v413
  %v498 = vunpack.c.h.b16 %v413
  %v499 = vunpack.c.l.b16 %v414
  %v500 = vunpack.c.l.b16 %v415
  %v501 = vunpack.c.h.b16 %v415
  %v502 = vunpack.c.l.b16 %v416
  %v503 = vunpack.c.l.b16 %v417
  %v504 = vunpack.c.h.b16 %v417
  %v505 = vunpack.c.l.b16 %v418
  %v506 = vunpack.c.l.b16 %v419
  %v507 = vunpack.c.h.b16 %v419
  %v508 = vunpack.c.l.b16 %v420
  %v509 = vunpack.c.l.b16 %v421
  %v510 = vunpack.c.h.b16 %v421
  %v511 = vunpack.c.l.b16 %v422
  %v512 = vunpack.c.l.b16 %v423
  %v513 = vunpack.c.h.b16 %v423
  %v514 = vunpack.c.l.b16 %v424
  %v515 = vunpack.c.l.b16 %v425
  %v516 = vunpack.c.h.b16 %v425
  %v517 = vunpack.c.l.b16 %v426
  %v518 = vunpack.c.l.b16 %v427
  %v519 = vunpack.c.h.b16 %v427
  %v520 = vunpack.c.l.b16 %v428
  %v521 = vpack.c.b16 %v476, %v473
  %v522 = vpack.c.b16 %v477, %v474
  %v523 = vpack.c.b16 %v478, %v475
  %v524 = vpack.c.b16 %v482, %v479
  %v525 = vpack.c.b16 %v483, %v480
  %v526 = vpack.c.b16 %v484, %v481
  %v527 = vpack.c.b16 %v488, %v485
  %v528 = vpack.c.b16 %v489, %v486
  %v529 = vpack.c.b16 %v490, %v487
  %v530 = vpack.c.b16 %v494, %v491
  %v531 = vpack.c.b16 %v495, %v492
  %v532 = vpack.c.b16 %v496, %v493
  %v533 = vpack.c.b16 %v500, %v497
  %v534 = vpack.c.b16 %v501, %v498
  %v535 = vpack.c.b16 %v502, %v499
  %v536 = vpack.c.b16 %v506, %v503
  %v537 = vpack.c.b16 %v507, %v504
  %v538 = vpack.c.b16 %v508, %v505
  %v539 = vpack.c.b16 %v512, %v509
  %v540 = vpack.c.b16 %v513, %v510
  %v541 = vpack.c.b16 %v514, %v511
  %v542 = vpack.c.b16 %v518, %v515
  %v543 = vpack.c.b16 %v519, %v516
  %v544 = vpack.c.b16 %v520, %v517
  %569 = vmatprep.subr.bf16.mxu0 %v543
  %570 = vmatpush1.bf16.msra.mxu0 %v542
  %571 = vmatprep.subr.bf16.mxu0 %v540
  %572 = vmatpush1.bf16.msra.mxu0 %v539
  %573 = vmatprep.subr.bf16.mxu0 %v537
  %574 = vmatpush1.bf16.msra.mxu0 %v536
  %575 = vmatprep.subr.bf16.mxu0 %v534
  %576 = vmatpush1.bf16.msra.mxu0 %v533
  %577 = vmatprep.subr.bf16.mxu0 %v531
  %578 = vmatpush1.bf16.msra.mxu0 %v530
  %579 = vmatprep.subr.bf16.mxu0 %v528
  %580 = vmatpush1.bf16.msra.mxu0 %v527
  %581 = vmatprep.subr.bf16.mxu0 %v525
  %582 = vmatpush1.bf16.msra.mxu0 %v524
  %583 = vmatprep.subr.bf16.mxu0 %v522
  %584 = vmatpush1.bf16.msra.mxu0 %v521
  %585 = vmatprep.subr.bf16.mxu0 0
  %586 = vmatpush2.bf16.msra.mxu0 0
  %587 = vmatprep.subr.bf16.mxu0 0
  %588 = vmatpush2.bf16.msra.mxu0 0
  %589 = vmatprep.subr.bf16.mxu0 0
  %590 = vmatpush2.bf16.msra.mxu0 0
  %591 = vmatprep.subr.bf16.mxu0 0
  %592 = vmatpush2.bf16.msra.mxu0 0
  %593 = vmatprep.subr.bf16.mxu0 0
  %594 = vmatpush2.bf16.msra.mxu0 0
  %595 = vmatprep.subr.bf16.mxu0 0
  %596 = vmatpush2.bf16.msra.mxu0 0
  %597 = vmatprep.subr.bf16.mxu0 0
  %598 = vmatpush2.bf16.msra.mxu0 0
  %599 = vmatprep.subr.bf16.mxu0 0
  %600 = vmatpush2.bf16.msra.mxu0 0
  %601 = vmatprep.mubr.bf16.mxu0 0
  %602 = vmatmul.mubr.bf16.gmra.mxu0 %v440
  %v603 = vpop.f32.mrf.mxu0
  %v604 = vadd.f32 0.0, %v603
  %v605 = vpop.f32.mrf.mxu0
  %v606 = vadd.f32 0.0, %v605
  %v607 = vpop.f32.mrf.mxu0
  %v608 = vpop.f32.mrf.mxu0
  %609 = vdwg.mxu0
  %610 = vmatprep.subr.bf16.mxu0 0
  %611 = vmatpush1.bf16.msra.mxu0 %v544
  %612 = vmatprep.subr.bf16.mxu0 0
  %613 = vmatpush1.bf16.msra.mxu0 %v541
  %614 = vmatprep.subr.bf16.mxu0 0
  %615 = vmatpush1.bf16.msra.mxu0 %v538
  %616 = vmatprep.subr.bf16.mxu0 0
  %617 = vmatpush1.bf16.msra.mxu0 %v535
  %618 = vmatprep.subr.bf16.mxu0 0
  %619 = vmatpush1.bf16.msra.mxu0 %v532
  %620 = vmatprep.subr.bf16.mxu0 0
  %621 = vmatpush1.bf16.msra.mxu0 %v529
  %622 = vmatprep.subr.bf16.mxu0 0
  %623 = vmatpush1.bf16.msra.mxu0 %v526
  %624 = vmatprep.subr.bf16.mxu0 0
  %625 = vmatpush1.bf16.msra.mxu0 %v523
  %626 = vmatprep.subr.bf16.mxu0 0
  %627 = vmatpush2.bf16.msra.mxu0 0
  %628 = vmatprep.subr.bf16.mxu0 0
  %629 = vmatpush2.bf16.msra.mxu0 0
  %630 = vmatprep.subr.bf16.mxu0 0
  %631 = vmatpush2.bf16.msra.mxu0 0
  %632 = vmatprep.subr.bf16.mxu0 0
  %633 = vmatpush2.bf16.msra.mxu0 0
  %634 = vmatprep.subr.bf16.mxu0 0
  %635 = vmatpush2.bf16.msra.mxu0 0
  %636 = vmatprep.subr.bf16.mxu0 0
  %637 = vmatpush2.bf16.msra.mxu0 0
  %638 = vmatprep.subr.bf16.mxu0 0
  %639 = vmatpush2.bf16.msra.mxu0 0
  %640 = vmatprep.subr.bf16.mxu0 0
  %641 = vmatpush2.bf16.msra.mxu0 0
  %642 = vmatprep.mubr.bf16.mxu0 0
  %643 = vmatmul.mubr.bf16.gmra.mxu0 %v440
  %v644 = vpop.f32.mrf.mxu0
  %v645 = vadd.f32 0.0, %v644
  %v646 = vpop.f32.mrf.mxu0
  %v647 = vpop.f32.mrf.mxu0
  %v648 = vpop.f32.mrf.mxu0
  %649 = vdwg.mxu0
  %v650 = vadd.f32 %v437, %v604
  %v651 = vxor.u32 %v650, 2147483648
  %v652 = vmul.f32 %v651, 1.442695
  %v653 = vpow.pop %v652
  %v654 = vadd.f32 %v653, 1.0
  %v655 = vrcp.pop %v654
  %v656 = vmul.f32 1.0, %v655
  %v657 = vadd.f32 %v438, %v606
  %v658 = vxor.u32 %v657, 2147483648
  %v659 = vmul.f32 %v658, 1.442695
  %v660 = vpow.pop %v659
  %v661 = vadd.f32 %v660, 1.0
  %v662 = vrcp.pop %v661
  %v663 = vmul.f32 1.0, %v662
  %v664 = vadd.f32 %v645, %v434
  %v665 = vmul.f32 %v656, %v664
  %v666 = vadd.f32 %v439, %v665
  %v667 = vtanh.pop %v666
  %v668 = vsub.f32 1.0, %v663
  %v669 = vmul.f32 %v668, %v667
  %v670 = vmul.f32 %v663, %v436
  %v671 = vadd.f32 %v669, %v670
  %v672 = vpack.c.bf16 %v671, %v671
  %673 = vst [vmem:[%s5] sm:$0xf] %v672
  %s674 = scalar_lea.vmem [#allocation3], 24
  %v675 = vld [vmem:[%s674] sm:$0xff]
  %v676 = vld [vmem:[%s674 + $0x8] sm:$0xff]
  %v677 = vld [vmem:[%s674 + $0x10] sm:$0xff]
  %678 = vmatprep.subr.bf16.mxu0 %v543
  %679 = vmatpush1.bf16.msra.mxu0 %v542
  %680 = vmatprep.subr.bf16.mxu0 %v540
  %681 = vmatpush1.bf16.msra.mxu0 %v539
  %682 = vmatprep.subr.bf16.mxu0 %v537
  %683 = vmatpush1.bf16.msra.mxu0 %v536
  %684 = vmatprep.subr.bf16.mxu0 %v534
  %685 = vmatpush1.bf16.msra.mxu0 %v533
  %686 = vmatprep.subr.bf16.mxu0 %v531
  %687 = vmatpush1.bf16.msra.mxu0 %v530
  %688 = vmatprep.subr.bf16.mxu0 %v528
  %689 = vmatpush1.bf16.msra.mxu0 %v527
  %690 = vmatprep.subr.bf16.mxu0 %v525
  %691 = vmatpush1.bf16.msra.mxu0 %v524
  %692 = vmatprep.subr.bf16.mxu0 %v522
  %693 = vmatpush1.bf16.msra.mxu0 %v521
  %694 = vmatprep.subr.bf16.mxu0 0
  %695 = vmatpush2.bf16.msra.mxu0 0
  %696 = vmatprep.subr.bf16.mxu0 0
  %697 = vmatpush2.bf16.msra.mxu0 0
  %698 = vmatprep.subr.bf16.mxu0 0
  %699 = vmatpush2.bf16.msra.mxu0 0
  %700 = vmatprep.subr.bf16.mxu0 0
  %701 = vmatpush2.bf16.msra.mxu0 0
  %702 = vmatprep.subr.bf16.mxu0 0
  %703 = vmatpush2.bf16.msra.mxu0 0
  %704 = vmatprep.subr.bf16.mxu0 0
  %705 = vmatpush2.bf16.msra.mxu0 0
  %706 = vmatprep.subr.bf16.mxu0 0
  %707 = vmatpush2.bf16.msra.mxu0 0
  %708 = vmatprep.subr.bf16.mxu0 0
  %709 = vmatpush2.bf16.msra.mxu0 0
  %710 = vmatprep.mubr.bf16.mxu0 0
  %711 = vmatmul.mubr.bf16.gmra.mxu0 %v672
  %v712 = vpop.f32.mrf.mxu0
  %v713 = vadd.f32 0.0, %v712
  %v714 = vpop.f32.mrf.mxu0
  %v715 = vadd.f32 0.0, %v714
  %v716 = vpop.f32.mrf.mxu0
  %v717 = vpop.f32.mrf.mxu0
  %718 = vdwg.mxu0
  %719 = vmatprep.subr.bf16.mxu0 0
  %720 = vmatpush1.bf16.msra.mxu0 %v544
  %721 = vmatprep.subr.bf16.mxu0 0
  %722 = vmatpush1.bf16.msra.mxu0 %v541
  %723 = vmatprep.subr.bf16.mxu0 0
  %724 = vmatpush1.bf16.msra.mxu0 %v538
  %725 = vmatprep.subr.bf16.mxu0 0
  %726 = vmatpush1.bf16.msra.mxu0 %v535
  %727 = vmatprep.subr.bf16.mxu0 0
  %728 = vmatpush1.bf16.msra.mxu0 %v532
  %729 = vmatprep.subr.bf16.mxu0 0
  %730 = vmatpush1.bf16.msra.mxu0 %v529
  %731 = vmatprep.subr.bf16.mxu0 0
  %732 = vmatpush1.bf16.msra.mxu0 %v526
  %733 = vmatprep.subr.bf16.mxu0 0
  %734 = vmatpush1.bf16.msra.mxu0 %v523
  %735 = vmatprep.subr.bf16.mxu0 0
  %736 = vmatpush2.bf16.msra.mxu0 0
  %737 = vmatprep.subr.bf16.mxu0 0
  %738 = vmatpush2.bf16.msra.mxu0 0
  %739 = vmatprep.subr.bf16.mxu0 0
  %740 = vmatpush2.bf16.msra.mxu0 0
  %741 = vmatprep.subr.bf16.mxu0 0
  %742 = vmatpush2.bf16.msra.mxu0 0
  %743 = vmatprep.subr.bf16.mxu0 0
  %744 = vmatpush2.bf16.msra.mxu0 0
  %745 = vmatprep.subr.bf16.mxu0 0
  %746 = vmatpush2.bf16.msra.mxu0 0
  %747 = vmatprep.subr.bf16.mxu0 0
  %748 = vmatpush2.bf16.msra.mxu0 0
  %749 = vmatprep.subr.bf16.mxu0 0
  %750 = vmatpush2.bf16.msra.mxu0 0
  %751 = vmatprep.mubr.bf16.mxu0 0
  %752 = vmatmul.mubr.bf16.gmra.mxu0 %v672
  %v753 = vpop.f32.mrf.mxu0
  %v754 = vadd.f32 0.0, %v753
  %v755 = vpop.f32.mrf.mxu0
  %v756 = vpop.f32.mrf.mxu0
  %v757 = vpop.f32.mrf.mxu0
  %758 = vdwg.mxu0
  %v759 = vadd.f32 %v675, %v713
  %v760 = vxor.u32 %v759, 2147483648
  %v761 = vmul.f32 %v760, 1.442695
  %v762 = vpow.pop %v761
  %v763 = vadd.f32 %v762, 1.0
  %v764 = vrcp.pop %v763
  %v765 = vmul.f32 1.0, %v764
  %v766 = vadd.f32 %v676, %v715
  %v767 = vxor.u32 %v766, 2147483648
  %v768 = vmul.f32 %v767, 1.442695
  %v769 = vpow.pop %v768
  %v770 = vadd.f32 %v769, 1.0
  %v771 = vrcp.pop %v770
  %v772 = vmul.f32 1.0, %v771
  %v773 = vadd.f32 %v754, %v434
  %v774 = vmul.f32 %v765, %v773
  %v775 = vadd.f32 %v677, %v774
  %v776 = vtanh.pop %v775
  %v777 = vsub.f32 1.0, %v772
  %v778 = vmul.f32 %v777, %v776
  %v779 = vmul.f32 %v772, %v671
  %v780 = vadd.f32 %v778, %v779
  %v781 = vpack.c.bf16 %v780, %v780
  %s782 = scalar_lea.vmem %s5, 4
  %783 = vst [vmem:[%s782] sm:$0xf] %v781
  %s784 = scalar_lea.vmem [#allocation3], 48
  %v785 = vld [vmem:[%s784] sm:$0xff]
  %v786 = vld [vmem:[%s784 + $0x8] sm:$0xff]
  %v787 = vld [vmem:[%s784 + $0x10] sm:$0xff]
  %788 = vmatprep.subr.bf16.mxu0 %v543
  %789 = vmatpush1.bf16.msra.mxu0 %v542
  %790 = vmatprep.subr.bf16.mxu0 %v540
  %791 = vmatpush1.bf16.msra.mxu0 %v539
  %792 = vmatprep.subr.bf16.mxu0 %v537
  %793 = vmatpush1.bf16.msra.mxu0 %v536
  %794 = vmatprep.subr.bf16.mxu0 %v534
  %795 = vmatpush1.bf16.msra.mxu0 %v533
  %796 = vmatprep.subr.bf16.mxu0 %v531
  %797 = vmatpush1.bf16.msra.mxu0 %v530
  %798 = vmatprep.subr.bf16.mxu0 %v528
  %799 = vmatpush1.bf16.msra.mxu0 %v527
  %800 = vmatprep.subr.bf16.mxu0 %v525
  %801 = vmatpush1.bf16.msra.mxu0 %v524
  %802 = vmatprep.subr.bf16.mxu0 %v522
  %803 = vmatpush1.bf16.msra.mxu0 %v521
  %804 = vmatprep.subr.bf16.mxu0 0
  %805 = vmatpush2.bf16.msra.mxu0 0
  %806 = vmatprep.subr.bf16.mxu0 0
  %807 = vmatpush2.bf16.msra.mxu0 0
  %808 = vmatprep.subr.bf16.mxu0 0
  %809 = vmatpush2.bf16.msra.mxu0 0
  %810 = vmatprep.subr.bf16.mxu0 0
  %811 = vmatpush2.bf16.msra.mxu0 0
  %812 = vmatprep.subr.bf16.mxu0 0
  %813 = vmatpush2.bf16.msra.mxu0 0
  %814 = vmatprep.subr.bf16.mxu0 0
  %815 = vmatpush2.bf16.msra.mxu0 0
  %816 = vmatprep.subr.bf16.mxu0 0
  %817 = vmatpush2.bf16.msra.mxu0 0
  %818 = vmatprep.subr.bf16.mxu0 0
  %819 = vmatpush2.bf16.msra.mxu0 0
  %820 = vmatprep.mubr.bf16.mxu0 0
  %821 = vmatmul.mubr.bf16.gmra.mxu0 %v781
  %v822 = vpop.f32.mrf.mxu0
  %v823 = vadd.f32 0.0, %v822
  %v824 = vpop.f32.mrf.mxu0
  %v825 = vadd.f32 0.0, %v824
  %v826 = vpop.f32.mrf.mxu0
  %v827 = vpop.f32.mrf.mxu0
  %828 = vdwg.mxu0
  %829 = vmatprep.subr.bf16.mxu0 0
  %830 = vmatpush1.bf16.msra.mxu0 %v544
  %831 = vmatprep.subr.bf16.mxu0 0
  %832 = vmatpush1.bf16.msra.mxu0 %v541
  %833 = vmatprep.subr.bf16.mxu0 0
  %834 = vmatpush1.bf16.msra.mxu0 %v538
  %835 = vmatprep.subr.bf16.mxu0 0
  %836 = vmatpush1.bf16.msra.mxu0 %v535
  %837 = vmatprep.subr.bf16.mxu0 0
  %838 = vmatpush1.bf16.msra.mxu0 %v532
  %839 = vmatprep.subr.bf16.mxu0 0
  %840 = vmatpush1.bf16.msra.mxu0 %v529
  %841 = vmatprep.subr.bf16.mxu0 0
  %842 = vmatpush1.bf16.msra.mxu0 %v526
  %843 = vmatprep.subr.bf16.mxu0 0
  %844 = vmatpush1.bf16.msra.mxu0 %v523
  %845 = vmatprep.subr.bf16.mxu0 0
  %846 = vmatpush2.bf16.msra.mxu0 0
  %847 = vmatprep.subr.bf16.mxu0 0
  %848 = vmatpush2.bf16.msra.mxu0 0
  %849 = vmatprep.subr.bf16.mxu0 0
  %850 = vmatpush2.bf16.msra.mxu0 0
  %851 = vmatprep.subr.bf16.mxu0 0
  %852 = vmatpush2.bf16.msra.mxu0 0
  %853 = vmatprep.subr.bf16.mxu0 0
  %854 = vmatpush2.bf16.msra.mxu0 0
  %855 = vmatprep.subr.bf16.mxu0 0
  %856 = vmatpush2.bf16.msra.mxu0 0
  %857 = vmatprep.subr.bf16.mxu0 0
  %858 = vmatpush2.bf16.msra.mxu0 0
  %859 = vmatprep.subr.bf16.mxu0 0
  %860 = vmatpush2.bf16.msra.mxu0 0
  %861 = vmatprep.mubr.bf16.mxu0 0
  %862 = vmatmul.mubr.bf16.gmra.mxu0 %v781
  %v863 = vpop.f32.mrf.mxu0
  %v864 = vadd.f32 0.0, %v863
  %v865 = vpop.f32.mrf.mxu0
  %v866 = vpop.f32.mrf.mxu0
  %v867 = vpop.f32.mrf.mxu0
  %868 = vdwg.mxu0
  %v869 = vadd.f32 %v785, %v823
  %v870 = vxor.u32 %v869, 2147483648
  %v871 = vmul.f32 %v870, 1.442695
  %v872 = vpow.pop %v871
  %v873 = vadd.f32 %v872, 1.0
  %v874 = vrcp.pop %v873
  %v875 = vmul.f32 1.0, %v874
  %v876 = vadd.f32 %v786, %v825
  %v877 = vxor.u32 %v876, 2147483648
  %v878 = vmul.f32 %v877, 1.442695
  %v879 = vpow.pop %v878
  %v880 = vadd.f32 %v879, 1.0
  %v881 = vrcp.pop %v880
  %v882 = vmul.f32 1.0, %v881
  %v883 = vadd.f32 %v864, %v434
  %v884 = vmul.f32 %v875, %v883
  %v885 = vadd.f32 %v787, %v884
  %v886 = vtanh.pop %v885
  %v887 = vsub.f32 1.0, %v882
  %v888 = vmul.f32 %v887, %v886
  %v889 = vmul.f32 %v882, %v780
  %v890 = vadd.f32 %v888, %v889
  %v891 = vpack.c.bf16 %v890, %v890
  %s892 = scalar_lea.vmem %s5, 8
  %893 = vst [vmem:[%s892] sm:$0xf] %v891
  %s894 = scalar_lea.vmem [#allocation3], 72
  %v895 = vld [vmem:[%s894] sm:$0xff]
  %v896 = vld [vmem:[%s894 + $0x8] sm:$0xff]
  %v897 = vld [vmem:[%s894 + $0x10] sm:$0xff]
  %898 = vmatprep.subr.bf16.mxu0 %v543
  %899 = vmatpush1.bf16.msra.mxu0 %v542
  %900 = vmatprep.subr.bf16.mxu0 %v540
  %901 = vmatpush1.bf16.msra.mxu0 %v539
  %902 = vmatprep.subr.bf16.mxu0 %v537
  %903 = vmatpush1.bf16.msra.mxu0 %v536
  %904 = vmatprep.subr.bf16.mxu0 %v534
  %905 = vmatpush1.bf16.msra.mxu0 %v533
  %906 = vmatprep.subr.bf16.mxu0 %v531
  %907 = vmatpush1.bf16.msra.mxu0 %v530
  %908 = vmatprep.subr.bf16.mxu0 %v528
  %909 = vmatpush1.bf16.msra.mxu0 %v527
  %910 = vmatprep.subr.bf16.mxu0 %v525
  %911 = vmatpush1.bf16.msra.mxu0 %v524
  %912 = vmatprep.subr.bf16.mxu0 %v522
  %913 = vmatpush1.bf16.msra.mxu0 %v521
  %914 = vmatprep.subr.bf16.mxu0 0
  %915 = vmatpush2.bf16.msra.mxu0 0
  %916 = vmatprep.subr.bf16.mxu0 0
  %917 = vmatpush2.bf16.msra.mxu0 0
  %918 = vmatprep.subr.bf16.mxu0 0
  %919 = vmatpush2.bf16.msra.mxu0 0
  %920 = vmatprep.subr.bf16.mxu0 0
  %921 = vmatpush2.bf16.msra.mxu0 0
  %922 = vmatprep.subr.bf16.mxu0 0
  %923 = vmatpush2.bf16.msra.mxu0 0
  %924 = vmatprep.subr.bf16.mxu0 0
  %925 = vmatpush2.bf16.msra.mxu0 0
  %926 = vmatprep.subr.bf16.mxu0 0
  %927 = vmatpush2.bf16.msra.mxu0 0
  %928 = vmatprep.subr.bf16.mxu0 0
  %929 = vmatpush2.bf16.msra.mxu0 0
  %930 = vmatprep.mubr.bf16.mxu0 0
  %931 = vmatmul.mubr.bf16.gmra.mxu0 %v891
  %v932 = vpop.f32.mrf.mxu0
  %v933 = vadd.f32 0.0, %v932
  %v934 = vpop.f32.mrf.mxu0
  %v935 = vadd.f32 0.0, %v934
  %v936 = vpop.f32.mrf.mxu0
  %v937 = vpop.f32.mrf.mxu0
  %938 = vdwg.mxu0
  %939 = vmatprep.subr.bf16.mxu0 0
  %940 = vmatpush1.bf16.msra.mxu0 %v544
  %941 = vmatprep.subr.bf16.mxu0 0
  %942 = vmatpush1.bf16.msra.mxu0 %v541
  %943 = vmatprep.subr.bf16.mxu0 0
  %944 = vmatpush1.bf16.msra.mxu0 %v538
  %945 = vmatprep.subr.bf16.mxu0 0
  %946 = vmatpush1.bf16.msra.mxu0 %v535
  %947 = vmatprep.subr.bf16.mxu0 0
  %948 = vmatpush1.bf16.msra.mxu0 %v532
  %949 = vmatprep.subr.bf16.mxu0 0
  %950 = vmatpush1.bf16.msra.mxu0 %v529
  %951 = vmatprep.subr.bf16.mxu0 0
  %952 = vmatpush1.bf16.msra.mxu0 %v526
  %953 = vmatprep.subr.bf16.mxu0 0
  %954 = vmatpush1.bf16.msra.mxu0 %v523
  %955 = vmatprep.subr.bf16.mxu0 0
  %956 = vmatpush2.bf16.msra.mxu0 0
  %957 = vmatprep.subr.bf16.mxu0 0
  %958 = vmatpush2.bf16.msra.mxu0 0
  %959 = vmatprep.subr.bf16.mxu0 0
  %960 = vmatpush2.bf16.msra.mxu0 0
  %961 = vmatprep.subr.bf16.mxu0 0
  %962 = vmatpush2.bf16.msra.mxu0 0
  %963 = vmatprep.subr.bf16.mxu0 0
  %964 = vmatpush2.bf16.msra.mxu0 0
  %965 = vmatprep.subr.bf16.mxu0 0
  %966 = vmatpush2.bf16.msra.mxu0 0
  %967 = vmatprep.subr.bf16.mxu0 0
  %968 = vmatpush2.bf16.msra.mxu0 0
  %969 = vmatprep.subr.bf16.mxu0 0
  %970 = vmatpush2.bf16.msra.mxu0 0
  %971 = vmatprep.mubr.bf16.mxu0 0
  %972 = vmatmul.mubr.bf16.gmra.mxu0 %v891
  %v973 = vpop.f32.mrf.mxu0
  %v974 = vadd.f32 0.0, %v973
  %v975 = vpop.f32.mrf.mxu0
  %v976 = vpop.f32.mrf.mxu0
  %v977 = vpop.f32.mrf.mxu0
  %978 = vdwg.mxu0
  %v979 = vadd.f32 %v895, %v933
  %v980 = vxor.u32 %v979, 2147483648
  %v981 = vmul.f32 %v980, 1.442695
  %v982 = vpow.pop %v981
  %v983 = vadd.f32 %v982, 1.0
  %v984 = vrcp.pop %v983
  %v985 = vmul.f32 1.0, %v984
  %v986 = vadd.f32 %v896, %v935
  %v987 = vxor.u32 %v986, 2147483648
  %v988 = vmul.f32 %v987, 1.442695
  %v989 = vpow.pop %v988
  %v990 = vadd.f32 %v989, 1.0
  %v991 = vrcp.pop %v990
  %v992 = vmul.f32 1.0, %v991
  %v993 = vadd.f32 %v974, %v434
  %v994 = vmul.f32 %v985, %v993
  %v995 = vadd.f32 %v897, %v994
  %v996 = vtanh.pop %v995
  %v997 = vsub.f32 1.0, %v992
  %v998 = vmul.f32 %v997, %v996
  %v999 = vmul.f32 %v992, %v890
  %v1000 = vadd.f32 %v998, %v999
  %v1001 = vpack.c.bf16 %v1000, %v1000
  %s1002 = scalar_lea.vmem %s5, 12
  %1003 = vst [vmem:[%s1002] sm:$0xf] %v1001
  %s1004 = scalar_lea.vmem [#allocation3], 96
  %v1005 = vld [vmem:[%s1004] sm:$0xff]
  %v1006 = vld [vmem:[%s1004 + $0x8] sm:$0xff]
  %v1007 = vld [vmem:[%s1004 + $0x10] sm:$0xff]
  %1008 = vmatprep.subr.bf16.mxu0 %v543
  %1009 = vmatpush1.bf16.msra.mxu0 %v542
  %1010 = vmatprep.subr.bf16.mxu0 %v540
  %1011 = vmatpush1.bf16.msra.mxu0 %v539
  %1012 = vmatprep.subr.bf16.mxu0 %v537
  %1013 = vmatpush1.bf16.msra.mxu0 %v536
  %1014 = vmatprep.subr.bf16.mxu0 %v534
  %1015 = vmatpush1.bf16.msra.mxu0 %v533
  %1016 = vmatprep.subr.bf16.mxu0 %v531
  %1017 = vmatpush1.bf16.msra.mxu0 %v530
  %1018 = vmatprep.subr.bf16.mxu0 %v528
  %1019 = vmatpush1.bf16.msra.mxu0 %v527
  %1020 = vmatprep.subr.bf16.mxu0 %v525
  %1021 = vmatpush1.bf16.msra.mxu0 %v524
  %1022 = vmatprep.subr.bf16.mxu0 %v522
  %1023 = vmatpush1.bf16.msra.mxu0 %v521
  %1024 = vmatprep.subr.bf16.mxu0 0
  %1025 = vmatpush2.bf16.msra.mxu0 0
  %1026 = vmatprep.subr.bf16.mxu0 0
  %1027 = vmatpush2.bf16.msra.mxu0 0
  %1028 = vmatprep.subr.bf16.mxu0 0
  %1029 = vmatpush2.bf16.msra.mxu0 0
  %1030 = vmatprep.subr.bf16.mxu0 0
  %1031 = vmatpush2.bf16.msra.mxu0 0
  %1032 = vmatprep.subr.bf16.mxu0 0
  %1033 = vmatpush2.bf16.msra.mxu0 0
  %1034 = vmatprep.subr.bf16.mxu0 0
  %1035 = vmatpush2.bf16.msra.mxu0 0
  %1036 = vmatprep.subr.bf16.mxu0 0
  %1037 = vmatpush2.bf16.msra.mxu0 0
  %1038 = vmatprep.subr.bf16.mxu0 0
  %1039 = vmatpush2.bf16.msra.mxu0 0
  %1040 = vmatprep.mubr.bf16.mxu0 0
  %1041 = vmatmul.mubr.bf16.gmra.mxu0 %v1001
  %v1042 = vpop.f32.mrf.mxu0
  %v1043 = vadd.f32 0.0, %v1042
  %v1044 = vpop.f32.mrf.mxu0
  %v1045 = vadd.f32 0.0, %v1044
  %v1046 = vpop.f32.mrf.mxu0
  %v1047 = vpop.f32.mrf.mxu0
  %1048 = vdwg.mxu0
  %1049 = vmatprep.subr.bf16.mxu0 0
  %1050 = vmatpush1.bf16.msra.mxu0 %v544
  %1051 = vmatprep.subr.bf16.mxu0 0
  %1052 = vmatpush1.bf16.msra.mxu0 %v541
  %1053 = vmatprep.subr.bf16.mxu0 0
  %1054 = vmatpush1.bf16.msra.mxu0 %v538
  %1055 = vmatprep.subr.bf16.mxu0 0
  %1056 = vmatpush1.bf16.msra.mxu0 %v535
  %1057 = vmatprep.subr.bf16.mxu0 0
  %1058 = vmatpush1.bf16.msra.mxu0 %v532
  %1059 = vmatprep.subr.bf16.mxu0 0
  %1060 = vmatpush1.bf16.msra.mxu0 %v529
  %1061 = vmatprep.subr.bf16.mxu0 0
  %1062 = vmatpush1.bf16.msra.mxu0 %v526
  %1063 = vmatprep.subr.bf16.mxu0 0
  %1064 = vmatpush1.bf16.msra.mxu0 %v523
  %1065 = vmatprep.subr.bf16.mxu0 0
  %1066 = vmatpush2.bf16.msra.mxu0 0
  %1067 = vmatprep.subr.bf16.mxu0 0
  %1068 = vmatpush2.bf16.msra.mxu0 0
  %1069 = vmatprep.subr.bf16.mxu0 0
  %1070 = vmatpush2.bf16.msra.mxu0 0
  %1071 = vmatprep.subr.bf16.mxu0 0
  %1072 = vmatpush2.bf16.msra.mxu0 0
  %1073 = vmatprep.subr.bf16.mxu0 0
  %1074 = vmatpush2.bf16.msra.mxu0 0
  %1075 = vmatprep.subr.bf16.mxu0 0
  %1076 = vmatpush2.bf16.msra.mxu0 0
  %1077 = vmatprep.subr.bf16.mxu0 0
  %1078 = vmatpush2.bf16.msra.mxu0 0
  %1079 = vmatprep.subr.bf16.mxu0 0
  %1080 = vmatpush2.bf16.msra.mxu0 0
  %1081 = vmatprep.mubr.bf16.mxu0 0
  %1082 = vmatmul.mubr.bf16.gmra.mxu0 %v1001
  %v1083 = vpop.f32.mrf.mxu0
  %v1084 = vadd.f32 0.0, %v1083
  %v1085 = vpop.f32.mrf.mxu0
  %v1086 = vpop.f32.mrf.mxu0
  %v1087 = vpop.f32.mrf.mxu0
  %1088 = vdwg.mxu0
  %v1089 = vadd.f32 %v1005, %v1043
  %v1090 = vxor.u32 %v1089, 2147483648
  %v1091 = vmul.f32 %v1090, 1.442695
  %v1092 = vpow.pop %v1091
  %v1093 = vadd.f32 %v1092, 1.0
  %v1094 = vrcp.pop %v1093
  %v1095 = vmul.f32 1.0, %v1094
  %v1096 = vadd.f32 %v1006, %v1045
  %v1097 = vxor.u32 %v1096, 2147483648
  %v1098 = vmul.f32 %v1097, 1.442695
  %v1099 = vpow.pop %v1098
  %v1100 = vadd.f32 %v1099, 1.0
  %v1101 = vrcp.pop %v1100
  %v1102 = vmul.f32 1.0, %v1101
  %v1103 = vadd.f32 %v1084, %v434
  %v1104 = vmul.f32 %v1095, %v1103
  %v1105 = vadd.f32 %v1007, %v1104
  %v1106 = vtanh.pop %v1105
  %v1107 = vsub.f32 1.0, %v1102
  %v1108 = vmul.f32 %v1107, %v1106
  %v1109 = vmul.f32 %v1102, %v1000
  %v1110 = vadd.f32 %v1108, %v1109
  %v1111 = vpack.c.bf16 %v1110, %v1110
  %s1112 = scalar_lea.vmem %s5, 16
  %1113 = vst [vmem:[%s1112] sm:$0xf] %v1111
  %s1114 = scalar_lea.vmem [#allocation3], 120
  %v1115 = vld [vmem:[%s1114] sm:$0xff]
  %v1116 = vld [vmem:[%s1114 + $0x8] sm:$0xff]
  %v1117 = vld [vmem:[%s1114 + $0x10] sm:$0xff]
  %1118 = vmatprep.subr.bf16.mxu0 %v543
  %1119 = vmatpush1.bf16.msra.mxu0 %v542
  %1120 = vmatprep.subr.bf16.mxu0 %v540
  %1121 = vmatpush1.bf16.msra.mxu0 %v539
  %1122 = vmatprep.subr.bf16.mxu0 %v537
  %1123 = vmatpush1.bf16.msra.mxu0 %v536
  %1124 = vmatprep.subr.bf16.mxu0 %v534
  %1125 = vmatpush1.bf16.msra.mxu0 %v533
  %1126 = vmatprep.subr.bf16.mxu0 %v531
  %1127 = vmatpush1.bf16.msra.mxu0 %v530
  %1128 = vmatprep.subr.bf16.mxu0 %v528
  %1129 = vmatpush1.bf16.msra.mxu0 %v527
  %1130 = vmatprep.subr.bf16.mxu0 %v525
  %1131 = vmatpush1.bf16.msra.mxu0 %v524
  %1132 = vmatprep.subr.bf16.mxu0 %v522
  %1133 = vmatpush1.bf16.msra.mxu0 %v521
  %1134 = vmatprep.subr.bf16.mxu0 0
  %1135 = vmatpush2.bf16.msra.mxu0 0
  %1136 = vmatprep.subr.bf16.mxu0 0
  %1137 = vmatpush2.bf16.msra.mxu0 0
  %1138 = vmatprep.subr.bf16.mxu0 0
  %1139 = vmatpush2.bf16.msra.mxu0 0
  %1140 = vmatprep.subr.bf16.mxu0 0
  %1141 = vmatpush2.bf16.msra.mxu0 0
  %1142 = vmatprep.subr.bf16.mxu0 0
  %1143 = vmatpush2.bf16.msra.mxu0 0
  %1144 = vmatprep.subr.bf16.mxu0 0
  %1145 = vmatpush2.bf16.msra.mxu0 0
  %1146 = vmatprep.subr.bf16.mxu0 0
  %1147 = vmatpush2.bf16.msra.mxu0 0
  %1148 = vmatprep.subr.bf16.mxu0 0
  %1149 = vmatpush2.bf16.msra.mxu0 0
  %1150 = vmatprep.mubr.bf16.mxu0 0
  %1151 = vmatmul.mubr.bf16.gmra.mxu0 %v1111
  %v1152 = vpop.f32.mrf.mxu0
  %v1153 = vadd.f32 0.0, %v1152
  %v1154 = vpop.f32.mrf.mxu0
  %v1155 = vadd.f32 0.0, %v1154
  %v1156 = vpop.f32.mrf.mxu0
  %v1157 = vpop.f32.mrf.mxu0
  %1158 = vdwg.mxu0
  %1159 = vmatprep.subr.bf16.mxu0 0
  %1160 = vmatpush1.bf16.msra.mxu0 %v544
  %1161 = vmatprep.subr.bf16.mxu0 0
  %1162 = vmatpush1.bf16.msra.mxu0 %v541
  %1163 = vmatprep.subr.bf16.mxu0 0
  %1164 = vmatpush1.bf16.msra.mxu0 %v538
  %1165 = vmatprep.subr.bf16.mxu0 0
  %1166 = vmatpush1.bf16.msra.mxu0 %v535
  %1167 = vmatprep.subr.bf16.mxu0 0
  %1168 = vmatpush1.bf16.msra.mxu0 %v532
  %1169 = vmatprep.subr.bf16.mxu0 0
  %1170 = vmatpush1.bf16.msra.mxu0 %v529
  %1171 = vmatprep.subr.bf16.mxu0 0
  %1172 = vmatpush1.bf16.msra.mxu0 %v526
  %1173 = vmatprep.subr.bf16.mxu0 0
  %1174 = vmatpush1.bf16.msra.mxu0 %v523
  %1175 = vmatprep.subr.bf16.mxu0 0
  %1176 = vmatpush2.bf16.msra.mxu0 0
  %1177 = vmatprep.subr.bf16.mxu0 0
  %1178 = vmatpush2.bf16.msra.mxu0 0
  %1179 = vmatprep.subr.bf16.mxu0 0
  %1180 = vmatpush2.bf16.msra.mxu0 0
  %1181 = vmatprep.subr.bf16.mxu0 0
  %1182 = vmatpush2.bf16.msra.mxu0 0
  %1183 = vmatprep.subr.bf16.mxu0 0
  %1184 = vmatpush2.bf16.msra.mxu0 0
  %1185 = vmatprep.subr.bf16.mxu0 0
  %1186 = vmatpush2.bf16.msra.mxu0 0
  %1187 = vmatprep.subr.bf16.mxu0 0
  %1188 = vmatpush2.bf16.msra.mxu0 0
  %1189 = vmatprep.subr.bf16.mxu0 0
  %1190 = vmatpush2.bf16.msra.mxu0 0
  %1191 = vmatprep.mubr.bf16.mxu0 0
  %1192 = vmatmul.mubr.bf16.gmra.mxu0 %v1111
  %v1193 = vpop.f32.mrf.mxu0
  %v1194 = vadd.f32 0.0, %v1193
  %v1195 = vpop.f32.mrf.mxu0
  %v1196 = vpop.f32.mrf.mxu0
  %v1197 = vpop.f32.mrf.mxu0
  %1198 = vdwg.mxu0
  %v1199 = vadd.f32 %v1115, %v1153
  %v1200 = vxor.u32 %v1199, 2147483648
  %v1201 = vmul.f32 %v1200, 1.442695
  %v1202 = vpow.pop %v1201
  %v1203 = vadd.f32 %v1202, 1.0
  %v1204 = vrcp.pop %v1203
  %v1205 = vmul.f32 1.0, %v1204
  %v1206 = vadd.f32 %v1116, %v1155
  %v1207 = vxor.u32 %v1206, 2147483648
  %v1208 = vmul.f32 %v1207, 1.442695
  %v1209 = vpow.pop %v1208
  %v1210 = vadd.f32 %v1209, 1.0
  %v1211 = vrcp.pop %v1210
  %v1212 = vmul.f32 1.0, %v1211
  %v1213 = vadd.f32 %v1194, %v434
  %v1214 = vmul.f32 %v1205, %v1213
  %v1215 = vadd.f32 %v1117, %v1214
  %v1216 = vtanh.pop %v1215
  %v1217 = vsub.f32 1.0, %v1212
  %v1218 = vmul.f32 %v1217, %v1216
  %v1219 = vmul.f32 %v1212, %v1110
  %v1220 = vadd.f32 %v1218, %v1219
  %v1221 = vpack.c.bf16 %v1220, %v1220
  %s1222 = scalar_lea.vmem %s5, 20
  %1223 = vst [vmem:[%s1222] sm:$0xf] %v1221
  %s1224 = scalar_lea.vmem [#allocation3], 144
  %v1225 = vld [vmem:[%s1224] sm:$0xff]
  %v1226 = vld [vmem:[%s1224 + $0x8] sm:$0xff]
  %v1227 = vld [vmem:[%s1224 + $0x10] sm:$0xff]
  %1228 = vmatprep.subr.bf16.mxu0 %v543
  %1229 = vmatpush1.bf16.msra.mxu0 %v542
  %1230 = vmatprep.subr.bf16.mxu0 %v540
  %1231 = vmatpush1.bf16.msra.mxu0 %v539
  %1232 = vmatprep.subr.bf16.mxu0 %v537
  %1233 = vmatpush1.bf16.msra.mxu0 %v536
  %1234 = vmatprep.subr.bf16.mxu0 %v534
  %1235 = vmatpush1.bf16.msra.mxu0 %v533
  %1236 = vmatprep.subr.bf16.mxu0 %v531
  %1237 = vmatpush1.bf16.msra.mxu0 %v530
  %1238 = vmatprep.subr.bf16.mxu0 %v528
  %1239 = vmatpush1.bf16.msra.mxu0 %v527
  %1240 = vmatprep.subr.bf16.mxu0 %v525
  %1241 = vmatpush1.bf16.msra.mxu0 %v524
  %1242 = vmatprep.subr.bf16.mxu0 %v522
  %1243 = vmatpush1.bf16.msra.mxu0 %v521
  %1244 = vmatprep.subr.bf16.mxu0 0
  %1245 = vmatpush2.bf16.msra.mxu0 0
  %1246 = vmatprep.subr.bf16.mxu0 0
  %1247 = vmatpush2.bf16.msra.mxu0 0
  %1248 = vmatprep.subr.bf16.mxu0 0
  %1249 = vmatpush2.bf16.msra.mxu0 0
  %1250 = vmatprep.subr.bf16.mxu0 0
  %1251 = vmatpush2.bf16.msra.mxu0 0
  %1252 = vmatprep.subr.bf16.mxu0 0
  %1253 = vmatpush2.bf16.msra.mxu0 0
  %1254 = vmatprep.subr.bf16.mxu0 0
  %1255 = vmatpush2.bf16.msra.mxu0 0
  %1256 = vmatprep.subr.bf16.mxu0 0
  %1257 = vmatpush2.bf16.msra.mxu0 0
  %1258 = vmatprep.subr.bf16.mxu0 0
  %1259 = vmatpush2.bf16.msra.mxu0 0
  %1260 = vmatprep.mubr.bf16.mxu0 0
  %1261 = vmatmul.mubr.bf16.gmra.mxu0 %v1221
  %v1262 = vpop.f32.mrf.mxu0
  %v1263 = vadd.f32 0.0, %v1262
  %v1264 = vpop.f32.mrf.mxu0
  %v1265 = vadd.f32 0.0, %v1264
  %v1266 = vpop.f32.mrf.mxu0
  %v1267 = vpop.f32.mrf.mxu0
  %1268 = vdwg.mxu0
  %1269 = vmatprep.subr.bf16.mxu0 0
  %1270 = vmatpush1.bf16.msra.mxu0 %v544
  %1271 = vmatprep.subr.bf16.mxu0 0
  %1272 = vmatpush1.bf16.msra.mxu0 %v541
  %1273 = vmatprep.subr.bf16.mxu0 0
  %1274 = vmatpush1.bf16.msra.mxu0 %v538
  %1275 = vmatprep.subr.bf16.mxu0 0
  %1276 = vmatpush1.bf16.msra.mxu0 %v535
  %1277 = vmatprep.subr.bf16.mxu0 0
  %1278 = vmatpush1.bf16.msra.mxu0 %v532
  %1279 = vmatprep.subr.bf16.mxu0 0
  %1280 = vmatpush1.bf16.msra.mxu0 %v529
  %1281 = vmatprep.subr.bf16.mxu0 0
  %1282 = vmatpush1.bf16.msra.mxu0 %v526
  %1283 = vmatprep.subr.bf16.mxu0 0
  %1284 = vmatpush1.bf16.msra.mxu0 %v523
  %1285 = vmatprep.subr.bf16.mxu0 0
  %1286 = vmatpush2.bf16.msra.mxu0 0
  %1287 = vmatprep.subr.bf16.mxu0 0
  %1288 = vmatpush2.bf16.msra.mxu0 0
  %1289 = vmatprep.subr.bf16.mxu0 0
  %1290 = vmatpush2.bf16.msra.mxu0 0
  %1291 = vmatprep.subr.bf16.mxu0 0
  %1292 = vmatpush2.bf16.msra.mxu0 0
  %1293 = vmatprep.subr.bf16.mxu0 0
  %1294 = vmatpush2.bf16.msra.mxu0 0
  %1295 = vmatprep.subr.bf16.mxu0 0
  %1296 = vmatpush2.bf16.msra.mxu0 0
  %1297 = vmatprep.subr.bf16.mxu0 0
  %1298 = vmatpush2.bf16.msra.mxu0 0
  %1299 = vmatprep.subr.bf16.mxu0 0
  %1300 = vmatpush2.bf16.msra.mxu0 0
  %1301 = vmatprep.mubr.bf16.mxu0 0
  %1302 = vmatmul.mubr.bf16.gmra.mxu0 %v1221
  %v1303 = vpop.f32.mrf.mxu0
  %v1304 = vadd.f32 0.0, %v1303
  %v1305 = vpop.f32.mrf.mxu0
  %v1306 = vpop.f32.mrf.mxu0
  %v1307 = vpop.f32.mrf.mxu0
  %1308 = vdwg.mxu0
  %v1309 = vadd.f32 %v1225, %v1263
  %v1310 = vxor.u32 %v1309, 2147483648
  %v1311 = vmul.f32 %v1310, 1.442695
  %v1312 = vpow.pop %v1311
  %v1313 = vadd.f32 %v1312, 1.0
  %v1314 = vrcp.pop %v1313
  %v1315 = vmul.f32 1.0, %v1314
  %v1316 = vadd.f32 %v1226, %v1265
  %v1317 = vxor.u32 %v1316, 2147483648
  %v1318 = vmul.f32 %v1317, 1.442695
  %v1319 = vpow.pop %v1318
  %v1320 = vadd.f32 %v1319, 1.0
  %v1321 = vrcp.pop %v1320
  %v1322 = vmul.f32 1.0, %v1321
  %v1323 = vadd.f32 %v1304, %v434
  %v1324 = vmul.f32 %v1315, %v1323
  %v1325 = vadd.f32 %v1227, %v1324
  %v1326 = vtanh.pop %v1325
  %v1327 = vsub.f32 1.0, %v1322
  %v1328 = vmul.f32 %v1327, %v1326
  %v1329 = vmul.f32 %v1322, %v1220
  %v1330 = vadd.f32 %v1328, %v1329
  %v1331 = vpack.c.bf16 %v1330, %v1330
  %s1332 = scalar_lea.vmem %s5, 24
  %1333 = vst [vmem:[%s1332] sm:$0xf] %v1331
  %s1334 = scalar_lea.vmem [#allocation3], 168
  %v1335 = vld [vmem:[%s1334] sm:$0xff]
  %v1336 = vld [vmem:[%s1334 + $0x8] sm:$0xff]
  %v1337 = vld [vmem:[%s1334 + $0x10] sm:$0xff]
  %1338 = vmatprep.subr.bf16.mxu0 %v543
  %1339 = vmatpush1.bf16.msra.mxu0 %v542
  %1340 = vmatprep.subr.bf16.mxu0 %v540
  %1341 = vmatpush1.bf16.msra.mxu0 %v539
  %1342 = vmatprep.subr.bf16.mxu0 %v537
  %1343 = vmatpush1.bf16.msra.mxu0 %v536
  %1344 = vmatprep.subr.bf16.mxu0 %v534
  %1345 = vmatpush1.bf16.msra.mxu0 %v533
  %1346 = vmatprep.subr.bf16.mxu0 %v531
  %1347 = vmatpush1.bf16.msra.mxu0 %v530
  %1348 = vmatprep.subr.bf16.mxu0 %v528
  %1349 = vmatpush1.bf16.msra.mxu0 %v527
  %1350 = vmatprep.subr.bf16.mxu0 %v525
  %1351 = vmatpush1.bf16.msra.mxu0 %v524
  %1352 = vmatprep.subr.bf16.mxu0 %v522
  %1353 = vmatpush1.bf16.msra.mxu0 %v521
  %1354 = vmatprep.subr.bf16.mxu0 0
  %1355 = vmatpush2.bf16.msra.mxu0 0
  %1356 = vmatprep.subr.bf16.mxu0 0
  %1357 = vmatpush2.bf16.msra.mxu0 0
  %1358 = vmatprep.subr.bf16.mxu0 0
  %1359 = vmatpush2.bf16.msra.mxu0 0
  %1360 = vmatprep.subr.bf16.mxu0 0
  %1361 = vmatpush2.bf16.msra.mxu0 0
  %1362 = vmatprep.subr.bf16.mxu0 0
  %1363 = vmatpush2.bf16.msra.mxu0 0
  %1364 = vmatprep.subr.bf16.mxu0 0
  %1365 = vmatpush2.bf16.msra.mxu0 0
  %1366 = vmatprep.subr.bf16.mxu0 0
  %1367 = vmatpush2.bf16.msra.mxu0 0
  %1368 = vmatprep.subr.bf16.mxu0 0
  %1369 = vmatpush2.bf16.msra.mxu0 0
  %1370 = vmatprep.mubr.bf16.mxu0 0
  %1371 = vmatmul.mubr.bf16.gmra.mxu0 %v1331
  %v1372 = vpop.f32.mrf.mxu0
  %v1373 = vadd.f32 0.0, %v1372
  %v1374 = vpop.f32.mrf.mxu0
  %v1375 = vadd.f32 0.0, %v1374
  %v1376 = vpop.f32.mrf.mxu0
  %v1377 = vpop.f32.mrf.mxu0
  %1378 = vdwg.mxu0
  %1379 = vmatprep.subr.bf16.mxu0 0
  %1380 = vmatpush1.bf16.msra.mxu0 %v544
  %1381 = vmatprep.subr.bf16.mxu0 0
  %1382 = vmatpush1.bf16.msra.mxu0 %v541
  %1383 = vmatprep.subr.bf16.mxu0 0
  %1384 = vmatpush1.bf16.msra.mxu0 %v538
  %1385 = vmatprep.subr.bf16.mxu0 0
  %1386 = vmatpush1.bf16.msra.mxu0 %v535
  %1387 = vmatprep.subr.bf16.mxu0 0
  %1388 = vmatpush1.bf16.msra.mxu0 %v532
  %1389 = vmatprep.subr.bf16.mxu0 0
  %1390 = vmatpush1.bf16.msra.mxu0 %v529
  %1391 = vmatprep.subr.bf16.mxu0 0
  %1392 = vmatpush1.bf16.msra.mxu0 %v526
  %1393 = vmatprep.subr.bf16.mxu0 0
  %1394 = vmatpush1.bf16.msra.mxu0 %v523
  %1395 = vmatprep.subr.bf16.mxu0 0
  %1396 = vmatpush2.bf16.msra.mxu0 0
  %1397 = vmatprep.subr.bf16.mxu0 0
  %1398 = vmatpush2.bf16.msra.mxu0 0
  %1399 = vmatprep.subr.bf16.mxu0 0
  %1400 = vmatpush2.bf16.msra.mxu0 0
  %1401 = vmatprep.subr.bf16.mxu0 0
  %1402 = vmatpush2.bf16.msra.mxu0 0
  %1403 = vmatprep.subr.bf16.mxu0 0
  %1404 = vmatpush2.bf16.msra.mxu0 0
  %1405 = vmatprep.subr.bf16.mxu0 0
  %1406 = vmatpush2.bf16.msra.mxu0 0
  %1407 = vmatprep.subr.bf16.mxu0 0
  %1408 = vmatpush2.bf16.msra.mxu0 0
  %1409 = vmatprep.subr.bf16.mxu0 0
  %1410 = vmatpush2.bf16.msra.mxu0 0
  %1411 = vmatprep.mubr.bf16.mxu0 0
  %1412 = vmatmul.mubr.bf16.gmra.mxu0 %v1331
  %v1413 = vpop.f32.mrf.mxu0
  %v1414 = vadd.f32 0.0, %v1413
  %v1415 = vpop.f32.mrf.mxu0
  %v1416 = vpop.f32.mrf.mxu0
  %v1417 = vpop.f32.mrf.mxu0
  %1418 = vdwg.mxu0
  %v1419 = vadd.f32 %v1335, %v1373
  %v1420 = vxor.u32 %v1419, 2147483648
  %v1421 = vmul.f32 %v1420, 1.442695
  %v1422 = vpow.pop %v1421
  %v1423 = vadd.f32 %v1422, 1.0
  %v1424 = vrcp.pop %v1423
  %v1425 = vmul.f32 1.0, %v1424
  %v1426 = vadd.f32 %v1336, %v1375
  %v1427 = vxor.u32 %v1426, 2147483648
  %v1428 = vmul.f32 %v1427, 1.442695
  %v1429 = vpow.pop %v1428
  %v1430 = vadd.f32 %v1429, 1.0
  %v1431 = vrcp.pop %v1430
  %v1432 = vmul.f32 1.0, %v1431
  %v1433 = vadd.f32 %v1414, %v434
  %v1434 = vmul.f32 %v1425, %v1433
  %v1435 = vadd.f32 %v1337, %v1434
  %v1436 = vtanh.pop %v1435
  %v1437 = vsub.f32 1.0, %v1432
  %v1438 = vmul.f32 %v1437, %v1436
  %v1439 = vmul.f32 %v1432, %v1330
  %v1440 = vadd.f32 %v1438, %v1439
  %v1441 = vpack.c.bf16 %v1440, %v1440
  %s1442 = scalar_lea.vmem %s5, 28
  %1443 = vst [vmem:[%s1442] sm:$0xf] %v1441
  %1444 = vst [vmem:[#allocation2] sm:$0xff] %v1440
  // Predicated region
  $region26: #{seq2seq_encoder_forward.1} parent=0 // pred_check
    _
  $region27: #{seq2seq_encoder_forward.1} parent=0 // pred_check_branch
    %1446 = sbr.rel (0) target = $region29
  $region28: #{seq2seq_encoder_forward.1} parent=0 // pred_region
    _
  $region29: #{seq2seq_encoder_forward.1} parent=0 // pred_fallthru
    _
  // Predicated region
  $region30: #{seq2seq_encoder_forward.1} parent=0 // pred_check
    _
  $region31: #{seq2seq_encoder_forward.1} parent=0 // pred_check_branch
    %1448 = sbr.rel (0) target = $region33
  $region32: #{seq2seq_encoder_forward.1} parent=0 // pred_region
    _
  $region33: #{seq2seq_encoder_forward.1} parent=0 // pred_fallthru
    _

</llo_original>
